<compile_context>
chip_gen: v7x
topology: tpu7x:2x2x1
jax: 0.10.0
libtpu: 0.0.40
codegen_flags: <defaults>
</compile_context>

<pallas_src>
import functools

import numpy as np
import jax
import jax.numpy as jnp
from jax import lax
from jax.experimental import pallas as pl
from jax.experimental.pallas import tpu as pltpu

PAD = 3                                           # max dilation reach
DILATIONS = ((1, 1), (3, 1), (1, 3), (3, 3))      # branch1x1, 3x1, 1x3, 3x3
ROW_OFFS = (-3, -1, 0, 1, 3)                      # separable unique row offsets
COL_OFFS = (-3, -1, 0, 1, 3)                      # separable unique col offsets
FUSE_ROW_OFFS = (-1, 0, 1)                        # 3x3 fuse conv offsets
FUSE_COL_OFFS = (-1, 0, 1)


def _make_kernel(NB, C, Cmid_p, Lp, Wp, compute_dtype):
    # Flattened-canvas roll shifts: T[p] = v[p + off]  <=>  roll by (-off) % Lp.
    # Rolls compose additively and commute with the channel contraction, so a
    # (row + col) offset == row-roll before the dot + col-roll after the dot.
    row_shifts = tuple((-(ro * Wp)) % Lp for ro in ROW_OFFS)
    col_shifts = tuple((-co) % Lp for co in COL_OFFS)
    frow_shifts = tuple((-(ro * Wp)) % Lp for ro in FUSE_ROW_OFFS)
    fcol_shifts = tuple((-co) % Lp for co in FUSE_COL_OFFS)

    def kernel(x_ref, wu_ref, w2_ref, b2_ref, w3_ref, mask_ref, out_ref,
               xk_ref, mk_ref):
        # x_ref   : (NB, C, Lp)           NB images, spatially padded by 3, flattened
        # wu_ref  : (5*Cmid_p, 5*C)       branch weights (col-groups on M, row-groups on K)
        # w2_ref  : (3*Cmid_p, 3*Cmid_p)  3x3 fuse conv, BN scale folded (f32)
        # b2_ref  : (Cmid_p, 1)           folded BN bias (f32)
        # w3_ref  : (Cmid_p, 1)           final 1x1 conv (f32)
        # mask_ref: (1, Lp)               1.0 on the (H, W) interior
        # out_ref : (NB, 1, Lp)           lane-dense gate per image
        # xk_ref  : (5*C, Lp)  scratch    row-rolled K-stack of x (compute dtype)
        # mk_ref  : (3*Cmid_p, Lp) scratch row-rolled K-stack of mid (f32)
        wu = wu_ref[...]
        w2 = w2_ref[...]
        b2 = b2_ref[...]
        w3 = w3_ref[...]
        mask = mask_ref[...]

        # Rolled (not Python-unrolled) image loop: bounds live ranges to one
        # image's working set; per-iteration body (2 dots, ~10 rolls) is large
        # enough that loop overhead is negligible.
        @pl.loop(0, NB)
        def _(img):
            x = x_ref[img]                                        # (C, Lp)

            # ---- branch convs + channel concat: row rolls -> K-stack -> ONE dot
            for r, s in enumerate(row_shifts):                    # static (5)
                xk_ref[r * C:(r + 1) * C, :] = (
                    x if s == 0 else pltpu.roll(x, s, axis=1))    # XLU
            p = jnp.dot(wu, xk_ref[...],
                        preferred_element_type=jnp.float32)       # (5*Cmid_p, Lp)

            # column rolls on the per-column-group partials, summed into mid
            mid = None
            for c, s in enumerate(col_shifts):                    # static (5)
                pc = p[c * Cmid_p:(c + 1) * Cmid_p, :]            # 8-row aligned
                pc = pc if s == 0 else pltpu.roll(pc, s, axis=1)
                mid = pc if mid is None else mid + pc

            # Zero outside the (H, W) interior == the zero padding the fuse
            # conv would see (also kills any pad-ring roll-wrap garbage).
            mid = mid * mask                                      # f32, VPU

            # ---- 3x3 fuse conv (BN scale folded): row rolls -> K-stack -> ONE dot
            for r, s in enumerate(frow_shifts):                   # static (3)
                mk_ref[r * Cmid_p:(r + 1) * Cmid_p, :] = (
                    mid if s == 0 else pltpu.roll(mid, s, axis=1))
            q = jnp.dot(w2, mk_ref[...],
                        preferred_element_type=jnp.float32)       # (3*Cmid_p, Lp)

            acc = None
            for c, s in enumerate(fcol_shifts):                   # static (3)
                qc = q[c * Cmid_p:(c + 1) * Cmid_p, :]
                qc = qc if s == 0 else pltpu.roll(qc, s, axis=1)
                acc = qc if acc is None else acc + qc

            # BN bias + ReLU, final 1x1 conv as a weighted row-sum (f32).
            acc = jnp.maximum(acc + b2, 0.0)
            out_ref[img] = jnp.sum(acc * w3, axis=0, keepdims=True)

    return kernel


def spatial_gate_forward(x_nchw, wu_big, w2_big, b2, w3, *,
                         images_per_step=8, compute_dtype=jnp.float32,
                         expand=True):
    """SpatialGate forward.  x_nchw: (N, C, H, W) float32.

    images_per_step: images per grid step (amortizes grid-step overhead; pick
      so each step moves >= 256KB from HBM and, on v7x, the grid length stays
      >= 2 and even so both TensorCores get work).
    compute_dtype: dtype of the x slab / branch weights / branch dot operands
      (jnp.bfloat16 on v6e/v7x for native MXU rate + half the HBM traffic;
      mask / bias / ReLU / row-sum always stay f32).
    expand: materialize the expand_as(x) broadcast (module semantics).  Fused
      consumers should pass expand=False and use the (N, 1, H, W) gate.
    """
    N, C, H, W = x_nchw.shape
    Cmid_p = b2.shape[0]
    Hp, Wp = H + 2 * PAD, W + 2 * PAD
    L = Hp * Wp
    Lp = -(-L // 128) * 128                       # lane-dense flattened length

    NB = max(1, min(images_per_step, N))
    N_pad = -(-N // NB) * NB
    grid = N_pad // NB

    x = x_nchw.astype(jnp.float32)
    xp = jnp.pad(x, ((0, N_pad - N), (0, 0), (PAD, PAD), (PAD, PAD)))   # NCHW
    x_slab = jnp.pad(xp.reshape(N_pad, C, L),
                     ((0, 0), (0, 0), (0, Lp - L))).astype(compute_dtype)

    # Interior mask, built host-side (2 KB, static, shared across the grid).
    flat = np.arange(Lp)
    rows, cols = flat // Wp, flat % Wp
    interior = ((rows >= PAD) & (rows < PAD + H) &
                (cols >= PAD) & (cols < PAD + W))
    mask = jnp.asarray(interior.reshape(1, Lp).astype(np.float32))

    wu_c = wu_big.astype(compute_dtype)           # big branch dot operands
    w2_c = w2_big.astype(jnp.float32)             # tiny fuse dot stays f32

    kernel = _make_kernel(NB, C, Cmid_p, Lp, Wp, compute_dtype)

    gate = pl.pallas_call(
        kernel,
        out_shape=jax.ShapeDtypeStruct((N_pad, 1, Lp), jnp.float32),
        grid_spec=pltpu.PrefetchScalarGridSpec(
            num_scalar_prefetch=0,
            grid=(grid,),
            in_specs=[
                pl.BlockSpec((NB, C, Lp), lambda n: (n, 0, 0)),
                pl.BlockSpec(wu_c.shape, lambda n: (0, 0)),
                pl.BlockSpec(w2_c.shape, lambda n: (0, 0)),
                pl.BlockSpec(b2.shape, lambda n: (0, 0)),
                pl.BlockSpec(w3.shape, lambda n: (0, 0)),
                pl.BlockSpec((1, Lp), lambda n: (0, 0)),
            ],
            out_specs=pl.BlockSpec((NB, 1, Lp), lambda n: (n, 0, 0)),
            scratch_shapes=[
                pltpu.VMEM((len(ROW_OFFS) * C, Lp), compute_dtype),
                pltpu.VMEM((len(FUSE_ROW_OFFS) * Cmid_p, Lp), jnp.float32),
            ],
        ),
        compiler_params=pltpu.CompilerParams(
            dimension_semantics=("parallel",)),    # v7x: batch blocks on 2 TCs
    )(x_slab, wu_c, w2_c, b2, w3, mask)

    # Interior extraction + reshape (layout plumbing outside the kernel).
    gate = gate[:N, :, :L].reshape(N, 1, Hp, Wp)[:, :, PAD:PAD + H, PAD:PAD + W]
    if expand:
        # expand_as(x): PyTorch returns a broadcast view; materialize only when
        # asked (a fused consumer should use the (N, 1, H, W) gate directly).
        return jnp.broadcast_to(gate, (N, C, H, W))
    return gate


def init_params(key, gate_channel=16, reduction_ratio=4):
    """Deterministic synthetic parameters (shapes from SpatialGate.__init__)."""
    C = gate_channel
    Cmid = C // reduction_ratio
    Cb = Cmid // 4                        # per-branch output channels
    k0, k1, k2 = jax.random.split(key, 3)
    # conv weights stored HWIO (kH, kW, in, out)
    wb = 0.1 * jax.random.normal(k0, (4, 3, 3, C, Cb), jnp.float32)
    w2 = 0.1 * jax.random.normal(k1, (3, 3, Cmid, Cmid), jnp.float32)
    w3 = 0.1 * jax.random.normal(k2, (Cmid, 1), jnp.float32)
    # TODO(synk): BatchNorm2d is implemented in eval mode (running stats folded
    # into conv2); training-mode batch statistics are not computed.
    gamma = 1.0 + 0.1 * jnp.arange(Cmid, dtype=jnp.float32)
    beta = 0.01 * jnp.arange(Cmid, dtype=jnp.float32)
    mean = 0.05 * jnp.arange(Cmid, dtype=jnp.float32)
    var = 1.0 + 0.02 * jnp.arange(Cmid, dtype=jnp.float32)
    return dict(wb=wb, w2=w2, w3=w3, gamma=gamma, beta=beta, mean=mean, var=var)


def prepare_kernel_params(p, eps=1e-5):
    """Fold the module's weights into the kernel's dense, stacked matrices.

    Branch taps factor as (row offset) x (col offset); the 5 column groups are
    stacked along M and the 5 row groups along K so the kernel runs a single
    (5*Cmid_p, 5*C) @ (5*C, Lp) dot per image (same for the 3x3 fuse conv).
    Cmid is padded to a multiple of 8 (Cmid_p) so all M-slices of the dot
    results are sublane-tile aligned; pad rows carry zero weights/bias and
    contribute nothing to the output.
    """
    wb = np.asarray(p["wb"])              # (4, 3, 3, C, Cb) HWIO per branch
    w2 = np.asarray(p["w2"])              # (3, 3, Cmid, Cmid)
    n_br, _, _, C, Cb = wb.shape
    Cmid = n_br * Cb
    Cmid_p = max(8, -(-Cmid // 8) * 8)

    wu_big = np.zeros((len(COL_OFFS) * Cmid_p, len(ROW_OFFS) * C), np.float32)
    for r, ro in enumerate(ROW_OFFS):
        for c, co in enumerate(COL_OFFS):
            blk = np.zeros((Cmid, C), np.float32)
            for b, (dh, dw) in enumerate(DILATIONS):
                if ro in (-dh, 0, dh) and co in (-dw, 0, dw):
                    ky, kx = ro // dh + 1, co // dw + 1
                    blk[b * Cb:(b + 1) * Cb, :] = wb[b, ky, kx].T     # (Cb, C)
            wu_big[c * Cmid_p:c * Cmid_p + Cmid, r * C:(r + 1) * C] = blk

    # Fold eval-mode BatchNorm into the 3x3 fuse conv, stacked the same way.
    scale = np.asarray(p["gamma"]) / np.sqrt(np.asarray(p["var"]) + eps)
    bias = np.asarray(p["beta"]) - np.asarray(p["mean"]) * scale
    w2_big = np.zeros((len(FUSE_COL_OFFS) * Cmid_p,
                       len(FUSE_ROW_OFFS) * Cmid_p), np.float32)
    for r, ro in enumerate(FUSE_ROW_OFFS):
        for c, co in enumerate(FUSE_COL_OFFS):
            ky, kx = ro + 1, co + 1
            w2_big[c * Cmid_p:c * Cmid_p + Cmid,
                   r * Cmid_p:r * Cmid_p + Cmid] = (w2[ky, kx] * scale[None, :]).T

    b2 = np.zeros((Cmid_p, 1), np.float32)
    b2[:Cmid, 0] = bias
    w3 = np.zeros((Cmid_p, 1), np.float32)
    w3[:Cmid, 0] = np.asarray(p["w3"]).reshape(-1)
    return jnp.asarray(wu_big), jnp.asarray(w2_big), jnp.asarray(b2), jnp.asarray(w3)


def reference(x_nchw, p, eps=1e-5):
    """Pure-JAX reference matching the PyTorch forward (eval-mode BN)."""
    dn = ("NHWC", "HWIO", "NHWC")
    x = jnp.transpose(x_nchw, (0, 2, 3, 1))
    outs = []
    for b, (dh, dw) in enumerate(DILATIONS):
        outs.append(lax.conv_general_dilated(
            x, p["wb"][b], (1, 1), ((dh, dh), (dw, dw)),
            rhs_dilation=(dh, dw), dimension_numbers=dn))
    mid = jnp.concatenate(outs, axis=-1)
    y = lax.conv_general_dilated(mid, p["w2"], (1, 1), ((1, 1), (1, 1)),
                                 dimension_numbers=dn)
    y = (y - p["mean"]) / jnp.sqrt(p["var"] + eps) * p["gamma"] + p["beta"]
    y = jnp.maximum(y, 0.0)
    y = lax.conv_general_dilated(y, p["w3"].reshape(1, 1, -1, 1), (1, 1),
                                 ((0, 0), (0, 0)), dimension_numbers=dn)
    y = jnp.transpose(y, (0, 3, 1, 2))            # (N, 1, H, W)
    return jnp.broadcast_to(y, x_nchw.shape)      # expand_as(x)


if __name__ == "__main__":
    key = jax.random.PRNGKey(0)
    kx, kp = jax.random.split(key)

    # gate_channel=16 so C // 4 // 4 >= 1; N=16 with images_per_step=8 gives a
    # 2-long "parallel" grid (even and >= 2 -> both v7x TensorCores get work).
    N, C, H, W = 16, 16, 16, 16
    x = jax.random.normal(kx, (N, C, H, W), jnp.float32)

    params = init_params(kp, gate_channel=C, reduction_ratio=4)
    wu_big, w2_big, b2, w3 = prepare_kernel_params(params)
    ref = jax.block_until_ready(reference(x, params))

    # f32 operands: numerically tight path (and the v5e default).
    fwd_f32 = jax.jit(functools.partial(
        spatial_gate_forward, images_per_step=8, compute_dtype=jnp.float32))
    out = jax.block_until_ready(fwd_f32(x, wu_big, w2_big, b2, w3))
    assert out.shape == (N, C, H, W)
    np.testing.assert_allclose(np.asarray(out), np.asarray(ref),
                               rtol=1e-4, atol=1e-4)

    # bf16 branch-dot operands: v6e/v7x MXU-rate path (looser tolerance).
    fwd_bf16 = jax.jit(functools.partial(
        spatial_gate_forward, images_per_step=8, compute_dtype=jnp.bfloat16))
    out_bf16 = jax.block_until_ready(fwd_bf16(x, wu_big, w2_big, b2, w3))
    np.testing.assert_allclose(np.asarray(out_bf16), np.asarray(ref),
                               rtol=5e-2, atol=5e-2)

    print("KERNEL_OK")
</pallas_src>

<mosaic_0001>
module attributes {stable_mosaic.version = 11 : i64} {
  func.func @kernel(%arg0: i32, %arg1: memref<8x16x512xf32, #tpu.memory_space<vmem>>, %arg2: memref<40x80xf32, #tpu.memory_space<vmem>>, %arg3: memref<24x24xf32, #tpu.memory_space<vmem>>, %arg4: memref<8x1xf32, #tpu.memory_space<vmem>>, %arg5: memref<8x1xf32, #tpu.memory_space<vmem>>, %arg6: memref<1x512xf32, #tpu.memory_space<vmem>>, %arg7: memref<8x1x512xf32, #tpu.memory_space<vmem>>, %arg8: memref<80x512xf32, #tpu.memory_space<vmem>>, %arg9: memref<24x512xf32, #tpu.memory_space<vmem>>) attributes {dimension_semantics = [#tpu.dimension_semantics<parallel>], iteration_bounds = array<i64: 2>, scalar_prefetch = 0 : i64, scratch_operands = 2 : i64, tpu.core_type = #tpu.core_type<tc>, window_params = [{transform_indices = @transform_0, window_bounds = array<i64: 8, 16, 512>}, {pipeline_mode = #tpu.pipeline_mode<synchronous>, transform_indices = @transform_1, window_bounds = array<i64: 40, 80>}, {pipeline_mode = #tpu.pipeline_mode<synchronous>, transform_indices = @transform_2, window_bounds = array<i64: 24, 24>}, {pipeline_mode = #tpu.pipeline_mode<synchronous>, transform_indices = @transform_3, window_bounds = array<i64: 8, 1>}, {pipeline_mode = #tpu.pipeline_mode<synchronous>, transform_indices = @transform_4, window_bounds = array<i64: 8, 1>}, {pipeline_mode = #tpu.pipeline_mode<synchronous>, transform_indices = @transform_5, window_bounds = array<i64: 1, 512>}, {transform_indices = @transform_6, window_bounds = array<i64: 8, 1, 512>}]} {
    %c0 = arith.constant 0 : index
    %c0_0 = arith.constant 0 : index
    %0 = vector.load %arg2[%c0, %c0_0] : memref<40x80xf32, #tpu.memory_space<vmem>>, vector<40x80xf32>
    %c0_1 = arith.constant 0 : index
    %c0_2 = arith.constant 0 : index
    %1 = vector.load %arg3[%c0_1, %c0_2] : memref<24x24xf32, #tpu.memory_space<vmem>>, vector<24x24xf32>
    %c0_3 = arith.constant 0 : index
    %c0_4 = arith.constant 0 : index
    %2 = vector.load %arg4[%c0_3, %c0_4] : memref<8x1xf32, #tpu.memory_space<vmem>>, vector<8x1xf32>
    %c0_5 = arith.constant 0 : index
    %c0_6 = arith.constant 0 : index
    %3 = vector.load %arg5[%c0_5, %c0_6] : memref<8x1xf32, #tpu.memory_space<vmem>>, vector<8x1xf32>
    %c0_7 = arith.constant 0 : index
    %c0_8 = arith.constant 0 : index
    %4 = vector.load %arg6[%c0_7, %c0_8] : memref<1x512xf32, #tpu.memory_space<vmem>>, vector<1x512xf32>
    %c0_i32 = arith.constant 0 : i32
    %c8_i32 = arith.constant 8 : i32
    %5 = arith.addi %c0_i32, %c8_i32 : i32
    %c1_i32 = arith.constant 1 : i32
    scf.for %arg10 = %c0_i32 to %5 step %c1_i32  : i32 {
      %c1_i32_10 = arith.constant 1 : i32
      %6 = arith.muli %arg10, %c1_i32_10 : i32
      %c0_i32_11 = arith.constant 0 : i32
      %7 = arith.addi %c0_i32_11, %6 : i32
      %8 = arith.index_cast %7 : i32 to index
      %c0_12 = arith.constant 0 : index
      %c0_13 = arith.constant 0 : index
      %9 = vector.load %arg1[%8, %c0_12, %c0_13] : memref<8x16x512xf32, #tpu.memory_space<vmem>>, vector<1x16x512xf32>
      %10 = vector.shape_cast %9 : vector<1x16x512xf32> to vector<16x512xf32>
      %c66_i32 = arith.constant 66 : i32
      %11 = tpu.dynamic_rotate %10 by %c66_i32 dim 1 : vector<16x512xf32>, i32 -> vector<16x512xf32>
      %c0_14 = arith.constant 0 : index
      %c0_15 = arith.constant 0 : index
      %12 = vector.load %arg8[%c0_14, %c0_15] : memref<80x512xf32, #tpu.memory_space<vmem>>, vector<16x512xf32>
      tpu.vector_store %arg8[%c0_14, %c0_15], %11 {strides = array<i32>} : memref<80x512xf32, #tpu.memory_space<vmem>>, vector<16x512xf32>,
      %c22_i32 = arith.constant 22 : i32
      %13 = tpu.dynamic_rotate %10 by %c22_i32 dim 1 : vector<16x512xf32>, i32 -> vector<16x512xf32>
      %c16 = arith.constant 16 : index
      %c0_16 = arith.constant 0 : index
      %14 = vector.load %arg8[%c16, %c0_16] : memref<80x512xf32, #tpu.memory_space<vmem>>, vector<16x512xf32>
      tpu.vector_store %arg8[%c16, %c0_16], %13 {strides = array<i32>} : memref<80x512xf32, #tpu.memory_space<vmem>>, vector<16x512xf32>,
      %c32 = arith.constant 32 : index
      %c0_17 = arith.constant 0 : index
      %15 = vector.load %arg8[%c32, %c0_17] : memref<80x512xf32, #tpu.memory_space<vmem>>, vector<16x512xf32>
      tpu.vector_store %arg8[%c32, %c0_17], %10 {strides = array<i32>} : memref<80x512xf32, #tpu.memory_space<vmem>>, vector<16x512xf32>,
      %c490_i32 = arith.constant 490 : i32
      %16 = tpu.dynamic_rotate %10 by %c490_i32 dim 1 : vector<16x512xf32>, i32 -> vector<16x512xf32>
      %c48 = arith.constant 48 : index
      %c0_18 = arith.constant 0 : index
      %17 = vector.load %arg8[%c48, %c0_18] : memref<80x512xf32, #tpu.memory_space<vmem>>, vector<16x512xf32>
      tpu.vector_store %arg8[%c48, %c0_18], %16 {strides = array<i32>} : memref<80x512xf32, #tpu.memory_space<vmem>>, vector<16x512xf32>,
      %c446_i32 = arith.constant 446 : i32
      %18 = tpu.dynamic_rotate %10 by %c446_i32 dim 1 : vector<16x512xf32>, i32 -> vector<16x512xf32>
      %c64 = arith.constant 64 : index
      %c0_19 = arith.constant 0 : index
      %19 = vector.load %arg8[%c64, %c0_19] : memref<80x512xf32, #tpu.memory_space<vmem>>, vector<16x512xf32>
      tpu.vector_store %arg8[%c64, %c0_19], %18 {strides = array<i32>} : memref<80x512xf32, #tpu.memory_space<vmem>>, vector<16x512xf32>,
      %c0_20 = arith.constant 0 : index
      %c0_21 = arith.constant 0 : index
      %20 = vector.load %arg8[%c0_20, %c0_21] : memref<80x512xf32, #tpu.memory_space<vmem>>, vector<80x512xf32>
      %cst = arith.constant dense<0.000000e+00> : vector<40x512xf32>
      %21 = tpu.matmul %0, %20, %cst {dimension_numbers = #tpu.dot_dimension_numbers<[1], [0], [0], [1], [0, 0, 1, 1], [], []>} : vector<40x80xf32>, vector<80x512xf32>, vector<40x512xf32> -> vector<40x512xf32>
      %22 = vector.extract_strided_slice %21 {offsets = [0, 0], sizes = [8, 512], strides = [1, 1]} : vector<40x512xf32> to vector<8x512xf32>
      %c3_i32 = arith.constant 3 : i32
      %23 = tpu.dynamic_rotate %22 by %c3_i32 dim 1 : vector<8x512xf32>, i32 -> vector<8x512xf32>
      %24 = vector.extract_strided_slice %21 {offsets = [8, 0], sizes = [8, 512], strides = [1, 1]} : vector<40x512xf32> to vector<8x512xf32>
      %c1_i32_22 = arith.constant 1 : i32
      %25 = tpu.dynamic_rotate %24 by %c1_i32_22 dim 1 : vector<8x512xf32>, i32 -> vector<8x512xf32>
      %26 = arith.addf %23, %25 : vector<8x512xf32>
      %27 = vector.extract_strided_slice %21 {offsets = [16, 0], sizes = [8, 512], strides = [1, 1]} : vector<40x512xf32> to vector<8x512xf32>
      %28 = arith.addf %26, %27 : vector<8x512xf32>
      %29 = vector.extract_strided_slice %21 {offsets = [24, 0], sizes = [8, 512], strides = [1, 1]} : vector<40x512xf32> to vector<8x512xf32>
      %c511_i32 = arith.constant 511 : i32
      %30 = tpu.dynamic_rotate %29 by %c511_i32 dim 1 : vector<8x512xf32>, i32 -> vector<8x512xf32>
      %31 = arith.addf %28, %30 : vector<8x512xf32>
      %32 = vector.extract_strided_slice %21 {offsets = [32, 0], sizes = [8, 512], strides = [1, 1]} : vector<40x512xf32> to vector<8x512xf32>
      %c509_i32 = arith.constant 509 : i32
      %33 = tpu.dynamic_rotate %32 by %c509_i32 dim 1 : vector<8x512xf32>, i32 -> vector<8x512xf32>
      %34 = arith.addf %31, %33 : vector<8x512xf32>
      %35 = vector.broadcast %4 : vector<1x512xf32> to vector<8x512xf32>
      %36 = arith.mulf %34, %35 : vector<8x512xf32>
      %c22_i32_23 = arith.constant 22 : i32
      %37 = tpu.dynamic_rotate %36 by %c22_i32_23 dim 1 : vector<8x512xf32>, i32 -> vector<8x512xf32>
      %c0_24 = arith.constant 0 : index
      %c0_25 = arith.constant 0 : index
      %38 = vector.load %arg9[%c0_24, %c0_25] : memref<24x512xf32, #tpu.memory_space<vmem>>, vector<8x512xf32>
      tpu.vector_store %arg9[%c0_24, %c0_25], %37 {strides = array<i32>} : memref<24x512xf32, #tpu.memory_space<vmem>>, vector<8x512xf32>,
      %c8 = arith.constant 8 : index
      %c0_26 = arith.constant 0 : index
      %39 = vector.load %arg9[%c8, %c0_26] : memref<24x512xf32, #tpu.memory_space<vmem>>, vector<8x512xf32>
      tpu.vector_store %arg9[%c8, %c0_26], %36 {strides = array<i32>} : memref<24x512xf32, #tpu.memory_space<vmem>>, vector<8x512xf32>,
      %c490_i32_27 = arith.constant 490 : i32
      %40 = tpu.dynamic_rotate %36 by %c490_i32_27 dim 1 : vector<8x512xf32>, i32 -> vector<8x512xf32>
      %c16_28 = arith.constant 16 : index
      %c0_29 = arith.constant 0 : index
      %41 = vector.load %arg9[%c16_28, %c0_29] : memref<24x512xf32, #tpu.memory_space<vmem>>, vector<8x512xf32>
      tpu.vector_store %arg9[%c16_28, %c0_29], %40 {strides = array<i32>} : memref<24x512xf32, #tpu.memory_space<vmem>>, vector<8x512xf32>,
      %c0_30 = arith.constant 0 : index
      %c0_31 = arith.constant 0 : index
      %42 = vector.load %arg9[%c0_30, %c0_31] : memref<24x512xf32, #tpu.memory_space<vmem>>, vector<24x512xf32>
      %cst_32 = arith.constant dense<0.000000e+00> : vector<24x512xf32>
      %43 = tpu.matmul %1, %42, %cst_32 {dimension_numbers = #tpu.dot_dimension_numbers<[1], [0], [0], [1], [0, 0, 1, 1], [], []>} : vector<24x24xf32>, vector<24x512xf32>, vector<24x512xf32> -> vector<24x512xf32>
      %44 = vector.extract_strided_slice %43 {offsets = [0, 0], sizes = [8, 512], strides = [1, 1]} : vector<24x512xf32> to vector<8x512xf32>
      %c1_i32_33 = arith.constant 1 : i32
      %45 = tpu.dynamic_rotate %44 by %c1_i32_33 dim 1 : vector<8x512xf32>, i32 -> vector<8x512xf32>
      %46 = vector.extract_strided_slice %43 {offsets = [8, 0], sizes = [8, 512], strides = [1, 1]} : vector<24x512xf32> to vector<8x512xf32>
      %47 = arith.addf %45, %46 : vector<8x512xf32>
      %48 = vector.extract_strided_slice %43 {offsets = [16, 0], sizes = [8, 512], strides = [1, 1]} : vector<24x512xf32> to vector<8x512xf32>
      %c511_i32_34 = arith.constant 511 : i32
      %49 = tpu.dynamic_rotate %48 by %c511_i32_34 dim 1 : vector<8x512xf32>, i32 -> vector<8x512xf32>
      %50 = arith.addf %47, %49 : vector<8x512xf32>
      %51 = vector.broadcast %2 : vector<8x1xf32> to vector<8x512xf32>
      %52 = arith.addf %50, %51 : vector<8x512xf32>
      %cst_35 = arith.constant 0.000000e+00 : f32
      %53 = vector.broadcast %cst_35 : f32 to vector<8x512xf32>
      %54 = arith.maximumf %52, %53 : vector<8x512xf32>
      %55 = vector.broadcast %3 : vector<8x1xf32> to vector<8x512xf32>
      %56 = arith.mulf %54, %55 : vector<8x512xf32>
      %cst_36 = arith.constant dense<0.000000e+00> : vector<512xf32>
      %57 = vector.multi_reduction <add>, %56, %cst_36 [0] : vector<8x512xf32> to vector<512xf32>
      %58 = vector.shape_cast %57 : vector<512xf32> to vector<1x512xf32>
      %59 = arith.index_cast %7 : i32 to index
      %c0_37 = arith.constant 0 : index
      %c0_38 = arith.constant 0 : index
      %60 = vector.load %arg7[%59, %c0_37, %c0_38] : memref<8x1x512xf32, #tpu.memory_space<vmem>>, vector<1x1x512xf32>
      %61 = vector.shape_cast %60 : vector<1x1x512xf32> to vector<1x512xf32>
      %62 = vector.shape_cast %58 : vector<1x512xf32> to vector<1x1x512xf32>
      tpu.vector_store %arg7[%59, %c0_37, %c0_38], %62 {strides = array<i32>} : memref<8x1x512xf32, #tpu.memory_space<vmem>>, vector<1x1x512xf32>,
    }
    %c8_i32_9 = arith.constant 8 : i32
    return
  }
  func.func @transform_0(%arg0: i32) -> (i32, i32, i32) {
    %c0_i32 = arith.constant 0 : i32
    %c0_i32_0 = arith.constant 0 : i32
    %c0_i32_1 = arith.constant 0 : i32
    return %arg0, %c0_i32, %c0_i32_0 : i32, i32, i32
  }
  func.func @transform_1(%arg0: i32) -> (i32, i32) {
    %c0_i32 = arith.constant 0 : i32
    %c0_i32_0 = arith.constant 0 : i32
    %c0_i32_1 = arith.constant 0 : i32
    return %c0_i32, %c0_i32_0 : i32, i32
  }
  func.func @transform_2(%arg0: i32) -> (i32, i32) {
    %c0_i32 = arith.constant 0 : i32
    %c0_i32_0 = arith.constant 0 : i32
    %c0_i32_1 = arith.constant 0 : i32
    return %c0_i32, %c0_i32_0 : i32, i32
  }
  func.func @transform_3(%arg0: i32) -> (i32, i32) {
    %c0_i32 = arith.constant 0 : i32
    %c0_i32_0 = arith.constant 0 : i32
    %c0_i32_1 = arith.constant 0 : i32
    return %c0_i32, %c0_i32_0 : i32, i32
  }
  func.func @transform_4(%arg0: i32) -> (i32, i32) {
    %c0_i32 = arith.constant 0 : i32
    %c0_i32_0 = arith.constant 0 : i32
    %c0_i32_1 = arith.constant 0 : i32
    return %c0_i32, %c0_i32_0 : i32, i32
  }
  func.func @transform_5(%arg0: i32) -> (i32, i32) {
    %c0_i32 = arith.constant 0 : i32
    %c0_i32_0 = arith.constant 0 : i32
    %c0_i32_1 = arith.constant 0 : i32
    return %c0_i32, %c0_i32_0 : i32, i32
  }
  func.func @transform_6(%arg0: i32) -> (i32, i32, i32) {
    %c0_i32 = arith.constant 0 : i32
    %c0_i32_0 = arith.constant 0 : i32
    %c0_i32_1 = arith.constant 0 : i32
    return %arg0, %c0_i32, %c0_i32_0 : i32, i32, i32
  }
}

</mosaic_0001>

<llo_original>
// kernel: spatial_gate_forward.1
$region0: #{spatial_gate_forward.1}
  #allocation0 [shape = 'u32[]', space=smem, size = 0x4, offset = 0x4, fixed_abs, tag = 'smem constant byte address 0x4 - core index']
  #allocation1 [shape = 'u32[144,128]{1,0:T(1,128)}', space=vmem, size = 0x12000, scoped, tag = 'internal scratch']
  #allocation2 [shape = 'f32[80,512]{1,0:T(8,128)}', space=vmem, size = 0x28000, scoped, tag = 'scratch operand']
  #allocation3 [shape = 'f32[24,512]{1,0:T(8,128)}', space=vmem, size = 0xc000, scoped, tag = 'scratch operand']
  %s0 = inlined_call_operand.vmem [shape: f32[16,16,512], index: 0, kind: input, shape index: {}]
  %s1 = inlined_call_operand.vmem [shape: f32[40,80], index: 1, kind: input, shape index: {}]
  %s2 = inlined_call_operand.vmem [shape: f32[24,24], index: 2, kind: input, shape index: {}]
  %s3 = inlined_call_operand.vmem [shape: f32[8,1], index: 3, kind: input, shape index: {}]
  %s4 = inlined_call_operand.vmem [shape: f32[8,1], index: 4, kind: input, shape index: {}]
  %s5 = inlined_call_operand.vmem [shape: f32[1,512], index: 5, kind: input, shape index: {}]
  %s6 = inlined_call_operand.vmem [shape: f32[16,1,512], index: 6, kind: output, shape index: {}]
  %s7 = sld [smem:[#allocation0]]
  $region64: #{spatial_gate_forward.1} parent=0
    _
  %s9 = ssub.s32 1, %s7
  %s10 = scalar_select 0, %s9, %s7
  loop: start=0, step=1, limit=4
  $region2: #{spatial_gate_forward.1} parent=0 // loop_pre_header
    _
  $region3: #{spatial_gate_forward.1} parent=0 // loop_header
    %s12 = sphi 0, %s16
    %p13 = scmp.ge.s32.totalorder %s12, 4
    %s22 = sphi 0, %s24
    %s25 = sphi 0, %s22
    %s26 = sphi 0, %s25
    %s42 = sphi 0, %s26
    %s46 = sphi 0, %s46
    %s48 = sphi 0, %s46
    %s49 = sphi 0, %s48
    %s63 = sphi 0, %s49
    %s67 = sphi 0, %s67
    %s69 = sphi 0, %s67
    %s70 = sphi 0, %s69
    %s84 = sphi 0, %s70
    %s88 = sphi 0, %s88
    %s90 = sphi 0, %s88
    %s91 = sphi 0, %s90
    %s105 = sphi 0, %s91
    %s109 = sphi 0, %s109
    %s111 = sphi 0, %s109
    %s112 = sphi 0, %s111
    %s126 = sphi 0, %s112
    %s130 = sphi 0, %s130
    %s132 = sphi 0, %s130
    %s133 = sphi 0, %s132
    %s147 = sphi 0, %s133
    %s153 = sphi 0, %s155
    %s156 = sphi 0, %s153
    %s157 = sphi 0, %s156
    %s173 = sphi 0, %s157
  $region4: #{spatial_gate_forward.1} parent=0 // loop_header_branch
    %15 = sbr.rel (%p13) target = $region8
  $region5: #{spatial_gate_forward.1} parent=0 // loop_body
    %s17 = ssub.s32 %s12, 1
    %s18 = ssub.s32 %s12, 2
    %s19 = sadd.s32 %s12, 1
    %s20 = ssub.s32 %s12, %s19
    %p21 = scmp.eq.s32.totalorder %s20, 0
    %s23 = sadd.s32 %s22, 1
    %s24 = scalar_select %p21, %s22, %s23
    %p27 = pneg %p21
    %p28 = scmp.eq.s32.totalorder %s12, 1
    %p29 = por %p27, %p28
    %p30 = scmp.ne.s32.totalorder %s22, %s25
    %p31 = scmp.eq.s32.totalorder %s12, 0
    %p32 = por %p30, %p31
    %p33 = scmp.ne.s32.totalorder %s22, %s25
    %p34 = scmp.eq.s32.totalorder %s17, 1
    %p35 = por %p33, %p34
    %p36 = scmp.ne.s32.totalorder %s25, %s26
    %p37 = scmp.eq.s32.totalorder %s17, 0
    %p38 = por %p36, %p37
    %p39 = scmp.ne.s32.totalorder %s25, %s26
    %p40 = scmp.eq.s32.totalorder %s18, 1
    %p41 = por %p39, %p40
    %p43 = scmp.ne.s32.totalorder %s26, %s42
    %p44 = scmp.eq.s32.totalorder %s18, 0
    %p45 = por %p43, %p44
    %s47 = sadd.s32 %s46, 1
    %p50 = scmp.eq.s32.totalorder %s12, 1
    %p51 = scmp.ne.s32.totalorder %s46, %s48
    %p52 = scmp.eq.s32.totalorder %s12, 0
    %p53 = por %p51, %p52
    %p54 = scmp.ne.s32.totalorder %s46, %s48
    %p55 = scmp.eq.s32.totalorder %s17, 1
    %p56 = por %p54, %p55
    %p57 = scmp.ne.s32.totalorder %s48, %s49
    %p58 = scmp.eq.s32.totalorder %s17, 0
    %p59 = por %p57, %p58
    %p60 = scmp.ne.s32.totalorder %s48, %s49
    %p61 = scmp.eq.s32.totalorder %s18, 1
    %p62 = por %p60, %p61
    %p64 = scmp.ne.s32.totalorder %s49, %s63
    %p65 = scmp.eq.s32.totalorder %s18, 0
    %p66 = por %p64, %p65
    %s68 = sadd.s32 %s67, 1
    %p71 = scmp.eq.s32.totalorder %s12, 1
    %p72 = scmp.ne.s32.totalorder %s67, %s69
    %p73 = scmp.eq.s32.totalorder %s12, 0
    %p74 = por %p72, %p73
    %p75 = scmp.ne.s32.totalorder %s67, %s69
    %p76 = scmp.eq.s32.totalorder %s17, 1
    %p77 = por %p75, %p76
    %p78 = scmp.ne.s32.totalorder %s69, %s70
    %p79 = scmp.eq.s32.totalorder %s17, 0
    %p80 = por %p78, %p79
    %p81 = scmp.ne.s32.totalorder %s69, %s70
    %p82 = scmp.eq.s32.totalorder %s18, 1
    %p83 = por %p81, %p82
    %p85 = scmp.ne.s32.totalorder %s70, %s84
    %p86 = scmp.eq.s32.totalorder %s18, 0
    %p87 = por %p85, %p86
    %s89 = sadd.s32 %s88, 1
    %p92 = scmp.eq.s32.totalorder %s12, 1
    %p93 = scmp.ne.s32.totalorder %s88, %s90
    %p94 = scmp.eq.s32.totalorder %s12, 0
    %p95 = por %p93, %p94
    %p96 = scmp.ne.s32.totalorder %s88, %s90
    %p97 = scmp.eq.s32.totalorder %s17, 1
    %p98 = por %p96, %p97
    %p99 = scmp.ne.s32.totalorder %s90, %s91
    %p100 = scmp.eq.s32.totalorder %s17, 0
    %p101 = por %p99, %p100
    %p102 = scmp.ne.s32.totalorder %s90, %s91
    %p103 = scmp.eq.s32.totalorder %s18, 1
    %p104 = por %p102, %p103
    %p106 = scmp.ne.s32.totalorder %s91, %s105
    %p107 = scmp.eq.s32.totalorder %s18, 0
    %p108 = por %p106, %p107
    %s110 = sadd.s32 %s109, 1
    %p113 = scmp.eq.s32.totalorder %s12, 1
    %p114 = scmp.ne.s32.totalorder %s109, %s111
    %p115 = scmp.eq.s32.totalorder %s12, 0
    %p116 = por %p114, %p115
    %p117 = scmp.ne.s32.totalorder %s109, %s111
    %p118 = scmp.eq.s32.totalorder %s17, 1
    %p119 = por %p117, %p118
    %p120 = scmp.ne.s32.totalorder %s111, %s112
    %p121 = scmp.eq.s32.totalorder %s17, 0
    %p122 = por %p120, %p121
    %p123 = scmp.ne.s32.totalorder %s111, %s112
    %p124 = scmp.eq.s32.totalorder %s18, 1
    %p125 = por %p123, %p124
    %p127 = scmp.ne.s32.totalorder %s112, %s126
    %p128 = scmp.eq.s32.totalorder %s18, 0
    %p129 = por %p127, %p128
    %s131 = sadd.s32 %s130, 1
    %p134 = scmp.eq.s32.totalorder %s12, 1
    %p135 = scmp.ne.s32.totalorder %s130, %s132
    %p136 = scmp.eq.s32.totalorder %s12, 0
    %p137 = por %p135, %p136
    %p138 = scmp.ne.s32.totalorder %s130, %s132
    %p139 = scmp.eq.s32.totalorder %s17, 1
    %p140 = por %p138, %p139
    %p141 = scmp.ne.s32.totalorder %s132, %s133
    %p142 = scmp.eq.s32.totalorder %s17, 0
    %p143 = por %p141, %p142
    %p144 = scmp.ne.s32.totalorder %s132, %s133
    %p145 = scmp.eq.s32.totalorder %s18, 1
    %p146 = por %p144, %p145
    %p148 = scmp.ne.s32.totalorder %s133, %s147
    %p149 = scmp.eq.s32.totalorder %s18, 0
    %p150 = por %p148, %p149
    %s151 = ssub.s32 %s12, %s19
    %p152 = scmp.eq.s32.totalorder %s151, 0
    %s154 = sadd.s32 %s153, 1
    %s155 = scalar_select %p152, %s153, %s154
    %p158 = pneg %p152
    %p159 = scmp.eq.s32.totalorder %s12, 1
    %p160 = por %p158, %p159
    %p161 = scmp.ne.s32.totalorder %s153, %s156
    %p162 = scmp.eq.s32.totalorder %s12, 0
    %p163 = por %p161, %p162
    %p164 = scmp.ne.s32.totalorder %s153, %s156
    %p165 = scmp.eq.s32.totalorder %s17, 1
    %p166 = por %p164, %p165
    %p167 = scmp.ne.s32.totalorder %s156, %s157
    %p168 = scmp.eq.s32.totalorder %s17, 0
    %p169 = por %p167, %p168
    %p170 = scmp.ne.s32.totalorder %s156, %s157
    %p171 = scmp.eq.s32.totalorder %s18, 1
    %p172 = por %p170, %p171
    %p174 = scmp.ne.s32.totalorder %s157, %s173
    %p175 = scmp.eq.s32.totalorder %s18, 0
    %p176 = por %p174, %p175
    %p177 = scmp.le.s32.totalorder 1, %s12
    %p178 = scmp.lt.s32.totalorder %s12, 3
    %p179 = pnand %p177, %p178
    %p180 = pneg %p179
    // Predicated region
    $region9: #{spatial_gate_forward.1} parent=5 // pred_check
      _
    $region10: #{spatial_gate_forward.1} parent=5 // pred_check_branch
      %182 = sbr.rel (%p179) target = $region12
    $region11: #{spatial_gate_forward.1} parent=5 // pred_region
      %s183 = ssub.s32 %s12, 1
      // Predicated region
      $region13: #{spatial_gate_forward.1} parent=11 // pred_check
        %p184 = pneg %p59
      $region14: #{spatial_gate_forward.1} parent=11 // pred_check_branch
        %186 = sbr.rel (%p184) target = $region16
      $region15: #{spatial_gate_forward.1} parent=11 // pred_region
        _
      $region16: #{spatial_gate_forward.1} parent=11 // pred_fallthru
        _
      // Predicated region
      $region17: #{spatial_gate_forward.1} parent=11 // pred_check
        %p187 = pneg %p80
      $region18: #{spatial_gate_forward.1} parent=11 // pred_check_branch
        %189 = sbr.rel (%p187) target = $region20
      $region19: #{spatial_gate_forward.1} parent=11 // pred_region
        _
      $region20: #{spatial_gate_forward.1} parent=11 // pred_fallthru
        _
      // Predicated region
      $region21: #{spatial_gate_forward.1} parent=11 // pred_check
        %p190 = pneg %p101
      $region22: #{spatial_gate_forward.1} parent=11 // pred_check_branch
        %192 = sbr.rel (%p190) target = $region24
      $region23: #{spatial_gate_forward.1} parent=11 // pred_region
        _
      $region24: #{spatial_gate_forward.1} parent=11 // pred_fallthru
        _
      // Predicated region
      $region25: #{spatial_gate_forward.1} parent=11 // pred_check
        %p193 = pneg %p122
      $region26: #{spatial_gate_forward.1} parent=11 // pred_check_branch
        %195 = sbr.rel (%p193) target = $region28
      $region27: #{spatial_gate_forward.1} parent=11 // pred_region
        _
      $region28: #{spatial_gate_forward.1} parent=11 // pred_fallthru
        _
      // Predicated region
      $region29: #{spatial_gate_forward.1} parent=11 // pred_check
        %p196 = pneg %p143
      $region30: #{spatial_gate_forward.1} parent=11 // pred_check_branch
        %198 = sbr.rel (%p196) target = $region32
      $region31: #{spatial_gate_forward.1} parent=11 // pred_region
        _
      $region32: #{spatial_gate_forward.1} parent=11 // pred_fallthru
        _
    $region12: #{spatial_gate_forward.1} parent=5 // pred_fallthru
      _
    %p199 = scmp.lt.s32.totalorder %s12, 2
    // Predicated region
    $region33: #{spatial_gate_forward.1} parent=5 // pred_check
      %p200 = pneg %p199
    $region34: #{spatial_gate_forward.1} parent=5 // pred_check_branch
      %202 = sbr.rel (%p200) target = $region36
    $region35: #{spatial_gate_forward.1} parent=5 // pred_region
      // Predicated region
      $region37: #{spatial_gate_forward.1} parent=35 // pred_check
        %p203 = pneg %p32
      $region38: #{spatial_gate_forward.1} parent=35 // pred_check_branch
        %205 = sbr.rel (%p203) target = $region40
      $region39: #{spatial_gate_forward.1} parent=35 // pred_region
        %s206 = smul.u32 8, %s12
        %p207 = scmp.lt.s32.totalorder %s206, 15
        %s208 = scalar_select %p207, %s206, 15
        %s209 = smul.addr %s208, 8
        %s210 = smul.addr %s209, 8
        %s211 = scalar_lea.vmem %s0, %s210
        %s212 = smul.u32 8, %s12
      $region40: #{spatial_gate_forward.1} parent=35 // pred_fallthru
        _
    $region36: #{spatial_gate_forward.1} parent=5 // pred_fallthru
      _
    %p213 = scmp.le.s32.totalorder 1, %s12
    %p214 = scmp.lt.s32.totalorder %s12, 3
    %p215 = pnand %p213, %p214
    %p216 = pneg %p215
    // Predicated region
    $region41: #{spatial_gate_forward.1} parent=5 // pred_check
      _
    $region42: #{spatial_gate_forward.1} parent=5 // pred_check_branch
      %218 = sbr.rel (%p215) target = $region44
    $region43: #{spatial_gate_forward.1} parent=5 // pred_region
      %s219 = ssub.s32 %s12, 1
      %s220 = smul.u32 8, %s17
      %p221 = scmp.lt.s32.totalorder %s220, 15
      %s222 = scalar_select %p221, %s220, 15
      %s223 = smul.addr %s222, 8
      %s224 = smul.addr %s223, 8
      %s225 = scalar_lea.vmem %s0, %s224
      %p226 = pneg %p38
      %p227 = pneg %p35
      %p228 = pneg %p59
      %p229 = pneg %p56
      %p230 = pneg %p80
      %p231 = pneg %p77
      %p232 = pneg %p101
      %p233 = pneg %p98
      %p234 = pneg %p122
      %p235 = pneg %p119
      %p236 = pneg %p143
      %p237 = pneg %p140
      %p238 = pneg %p169
      %p239 = pneg %p166
      %s240 = smul.u32 8, %s17
      %p241 = scmp.lt.s32.totalorder %s240, 15
      %s242 = scalar_select %p241, %s240, 15
      %s243 = smul.addr %s242, 4
      %s244 = scalar_lea.vmem %s6, %s243
      %s245 = smul.u32 8, %s17
      %p246 = scmp.lt.s32.totalorder %s245, 15
      %s247 = scalar_select %p246, %s245, 15
      %s248 = smul.addr %s247, 8
      %s249 = smul.addr %s248, 8
      %s250 = scalar_lea.vmem %s0, %s249
      %s251 = smul.u32 8, %s17
      %s252 = smul.u32 8, %s17
      %p253 = scmp.lt.s32.totalorder %s252, 15
      %s254 = scalar_select %p253, %s252, 15
      %s255 = smul.addr %s254, 4
      %s256 = scalar_lea.vmem %s6, %s255
      %s257 = smul.u32 8, %s17
      %v258 = vld [vmem:[%s1] sm:$0xff]
      %v259 = vld [vmem:[%s1 + $0x8] sm:$0xff]
      %v260 = vld [vmem:[%s1 + $0x10] sm:$0xff]
      %v261 = vld [vmem:[%s1 + $0x18] sm:$0xff]
      %v262 = vld [vmem:[%s1 + $0x20] sm:$0xff]
      %v263 = vld [vmem:[%s2] sm:$0xff]
      %v264 = vld [vmem:[%s2 + $0x8] sm:$0xff]
      %v265 = vld [vmem:[%s2 + $0x10] sm:$0xff]
      %v266 = vld [vmem:[%s3] sm:$0xff]
      %v267 = vld [vmem:[%s4] sm:$0xff]
      %v268 = vld [vmem:[%s5] sm:$0xf]
      loop: start=0, step=1, limit=8
      $region45: #{spatial_gate_forward.1} parent=43 // loop_pre_header
        _
      $region46: #{spatial_gate_forward.1} parent=43 // loop_header
        %s270 = sphi 0, %s274
        %p271 = scmp.ge.s32.totalorder %s270, 8
      $region47: #{spatial_gate_forward.1} parent=43 // loop_header_branch
        %273 = sbr.rel (%p271) target = $region51
      $region48: #{spatial_gate_forward.1} parent=43 // loop_body
        %s275 = smul.u32 %s270, 8
        %s276 = smul.addr %s275, 8
        %s277 = scalar_lea.vmem %s250, %s276
        %v278 = vld [vmem:[%s277] sm:$0xff]
        %v279 = vld [vmem:[%s277 + $0x8] sm:$0xff]
        %v280 = vld [vmem:[%s277 + $0x10] sm:$0xff]
        %v281 = vld [vmem:[%s277 + $0x18] sm:$0xff]
        %v282 = vld [vmem:[%s277 + $0x20] sm:$0xff]
        %v283 = vld [vmem:[%s277 + $0x28] sm:$0xff]
        %v284 = vld [vmem:[%s277 + $0x30] sm:$0xff]
        %v285 = vld [vmem:[%s277 + $0x38] sm:$0xff]
        %286 = vrot.lane.b32.xlu0 %v278, 66
        %v287 = vpop.permute.xlu0 %286
        %288 = vrot.lane.b32.xlu0 %v282, 66
        %v289 = vpop.permute.xlu0 %288
        %290 = vrot.lane.b32.xlu0 %v279, 66
        %v291 = vpop.permute.xlu0 %290
        %292 = vrot.lane.b32.xlu0 %v283, 66
        %v293 = vpop.permute.xlu0 %292
        %294 = vrot.lane.b32.xlu0 %v280, 66
        %v295 = vpop.permute.xlu0 %294
        %296 = vrot.lane.b32.xlu0 %v284, 66
        %v297 = vpop.permute.xlu0 %296
        %298 = vrot.lane.b32.xlu0 %v281, 66
        %v299 = vpop.permute.xlu0 %298
        %300 = vrot.lane.b32.xlu0 %v285, 66
        %v301 = vpop.permute.xlu0 %300
        %v302 = vlaneseq
        %v303 = vand.u32 %v302, 127
        %vm304 = vcmp.lt.s32.totalorder %v303, 66
        %v305 = vsel %vm304, %v295, %v299
        %v306 = vsel %vm304, %v297, %v301
        %v307 = vsel %vm304, %v291, %v295
        %v308 = vsel %vm304, %v293, %v297
        %v309 = vsel %vm304, %v287, %v291
        %v310 = vsel %vm304, %v289, %v293
        %v311 = vsel %vm304, %v299, %v287
        %v312 = vsel %vm304, %v301, %v289
        %313 = vst [vmem:[#allocation2] sm:$0xff] %v311
        %314 = vst [vmem:[#allocation2 + $0x8] sm:$0xff] %v309
        %315 = vst [vmem:[#allocation2 + $0x10] sm:$0xff] %v307
        %316 = vst [vmem:[#allocation2 + $0x18] sm:$0xff] %v305
        %317 = vst [vmem:[#allocation2 + $0x20] sm:$0xff] %v312
        %318 = vst [vmem:[#allocation2 + $0x28] sm:$0xff] %v310
        %319 = vst [vmem:[#allocation2 + $0x30] sm:$0xff] %v308
        %320 = vst [vmem:[#allocation2 + $0x38] sm:$0xff] %v306
        %321 = vrot.lane.b32.xlu0 %v278, 22
        %v322 = vpop.permute.xlu0 %321
        %323 = vrot.lane.b32.xlu0 %v282, 22
        %v324 = vpop.permute.xlu0 %323
        %325 = vrot.lane.b32.xlu0 %v279, 22
        %v326 = vpop.permute.xlu0 %325
        %327 = vrot.lane.b32.xlu0 %v283, 22
        %v328 = vpop.permute.xlu0 %327
        %329 = vrot.lane.b32.xlu0 %v280, 22
        %v330 = vpop.permute.xlu0 %329
        %331 = vrot.lane.b32.xlu0 %v284, 22
        %v332 = vpop.permute.xlu0 %331
        %333 = vrot.lane.b32.xlu0 %v281, 22
        %v334 = vpop.permute.xlu0 %333
        %335 = vrot.lane.b32.xlu0 %v285, 22
        %v336 = vpop.permute.xlu0 %335
        %vm337 = vcmp.lt.s32.totalorder %v303, 22
        %v338 = vsel %vm337, %v330, %v334
        %v339 = vsel %vm337, %v332, %v336
        %v340 = vsel %vm337, %v326, %v330
        %v341 = vsel %vm337, %v328, %v332
        %v342 = vsel %vm337, %v322, %v326
        %v343 = vsel %vm337, %v324, %v328
        %v344 = vsel %vm337, %v334, %v322
        %v345 = vsel %vm337, %v336, %v324
        %346 = vst [vmem:[#allocation2 + $0x40] sm:$0xff] %v344
        %347 = vst [vmem:[#allocation2 + $0x48] sm:$0xff] %v342
        %348 = vst [vmem:[#allocation2 + $0x50] sm:$0xff] %v340
        %349 = vst [vmem:[#allocation2 + $0x58] sm:$0xff] %v338
        %350 = vst [vmem:[#allocation2 + $0x60] sm:$0xff] %v345
        %351 = vst [vmem:[#allocation2 + $0x68] sm:$0xff] %v343
        %352 = vst [vmem:[#allocation2 + $0x70] sm:$0xff] %v341
        %353 = vst [vmem:[#allocation2 + $0x78] sm:$0xff] %v339
        %354 = vst [vmem:[#allocation2 + $0x80] sm:$0xff] %v278
        %355 = vst [vmem:[#allocation2 + $0x88] sm:$0xff] %v279
        %356 = vst [vmem:[#allocation2 + $0x90] sm:$0xff] %v280
        %357 = vst [vmem:[#allocation2 + $0x98] sm:$0xff] %v281
        %358 = vst [vmem:[#allocation2 + $0xa0] sm:$0xff] %v282
        %359 = vst [vmem:[#allocation2 + $0xa8] sm:$0xff] %v283
        %360 = vst [vmem:[#allocation2 + $0xb0] sm:$0xff] %v284
        %361 = vst [vmem:[#allocation2 + $0xb8] sm:$0xff] %v285
        %362 = vrot.lane.b32.xlu0 %v278, 106
        %v363 = vpop.permute.xlu0 %362
        %364 = vrot.lane.b32.xlu0 %v282, 106
        %v365 = vpop.permute.xlu0 %364
        %366 = vrot.lane.b32.xlu0 %v279, 106
        %v367 = vpop.permute.xlu0 %366
        %368 = vrot.lane.b32.xlu0 %v283, 106
        %v369 = vpop.permute.xlu0 %368
        %370 = vrot.lane.b32.xlu0 %v280, 106
        %v371 = vpop.permute.xlu0 %370
        %372 = vrot.lane.b32.xlu0 %v284, 106
        %v373 = vpop.permute.xlu0 %372
        %374 = vrot.lane.b32.xlu0 %v281, 106
        %v375 = vpop.permute.xlu0 %374
        %376 = vrot.lane.b32.xlu0 %v285, 106
        %v377 = vpop.permute.xlu0 %376
        %vm378 = vcmp.lt.s32.totalorder %v303, 106
        %v379 = vsel %vm378, %v371, %v375
        %v380 = vsel %vm378, %v373, %v377
        %v381 = vsel %vm378, %v367, %v371
        %v382 = vsel %vm378, %v369, %v373
        %v383 = vsel %vm378, %v363, %v367
        %v384 = vsel %vm378, %v365, %v369
        %v385 = vsel %vm378, %v375, %v363
        %v386 = vsel %vm378, %v377, %v365
        %387 = vst [vmem:[#allocation2 + $0xc0] sm:$0xff] %v383
        %388 = vst [vmem:[#allocation2 + $0xc8] sm:$0xff] %v381
        %389 = vst [vmem:[#allocation2 + $0xd0] sm:$0xff] %v379
        %390 = vst [vmem:[#allocation2 + $0xd8] sm:$0xff] %v385
        %391 = vst [vmem:[#allocation2 + $0xe0] sm:$0xff] %v384
        %392 = vst [vmem:[#allocation2 + $0xe8] sm:$0xff] %v382
        %393 = vst [vmem:[#allocation2 + $0xf0] sm:$0xff] %v380
        %394 = vst [vmem:[#allocation2 + $0xf8] sm:$0xff] %v386
        %395 = vrot.lane.b32.xlu0 %v278, 62
        %v396 = vpop.permute.xlu0 %395
        %397 = vrot.lane.b32.xlu0 %v282, 62
        %v398 = vpop.permute.xlu0 %397
        %399 = vrot.lane.b32.xlu0 %v279, 62
        %v400 = vpop.permute.xlu0 %399
        %401 = vrot.lane.b32.xlu0 %v283, 62
        %v402 = vpop.permute.xlu0 %401
        %403 = vrot.lane.b32.xlu0 %v280, 62
        %v404 = vpop.permute.xlu0 %403
        %405 = vrot.lane.b32.xlu0 %v284, 62
        %v406 = vpop.permute.xlu0 %405
        %407 = vrot.lane.b32.xlu0 %v281, 62
        %v408 = vpop.permute.xlu0 %407
        %409 = vrot.lane.b32.xlu0 %v285, 62
        %v410 = vpop.permute.xlu0 %409
        %vm411 = vcmp.lt.s32.totalorder %v303, 62
        %v412 = vsel %vm411, %v404, %v408
        %v413 = vsel %vm411, %v406, %v410
        %v414 = vsel %vm411, %v400, %v404
        %v415 = vsel %vm411, %v402, %v406
        %v416 = vsel %vm411, %v396, %v400
        %v417 = vsel %vm411, %v398, %v402
        %v418 = vsel %vm411, %v408, %v396
        %v419 = vsel %vm411, %v410, %v398
        %420 = vst [vmem:[#allocation2 + $0x100] sm:$0xff] %v416
        %421 = vst [vmem:[#allocation2 + $0x108] sm:$0xff] %v414
        %422 = vst [vmem:[#allocation2 + $0x110] sm:$0xff] %v412
        %423 = vst [vmem:[#allocation2 + $0x118] sm:$0xff] %v418
        %424 = vst [vmem:[#allocation2 + $0x120] sm:$0xff] %v417
        %425 = vst [vmem:[#allocation2 + $0x128] sm:$0xff] %v415
        %426 = vst [vmem:[#allocation2 + $0x130] sm:$0xff] %v413
        %427 = vst [vmem:[#allocation2 + $0x138] sm:$0xff] %v419
        %v428 = vld [vmem:[#allocation2] sm:$0xff]
        %v429 = vld [vmem:[#allocation2 + $0x8] sm:$0xff]
        %v430 = vld [vmem:[#allocation2 + $0x10] sm:$0xff]
        %v431 = vld [vmem:[#allocation2 + $0x18] sm:$0xff]
        %v432 = vld [vmem:[#allocation2 + $0x20] sm:$0xff]
        %v433 = vld [vmem:[#allocation2 + $0x28] sm:$0xff]
        %v434 = vld [vmem:[#allocation2 + $0x30] sm:$0xff]
        %v435 = vld [vmem:[#allocation2 + $0x38] sm:$0xff]
        %v436 = vld [vmem:[#allocation2 + $0x40] sm:$0xff]
        %v437 = vld [vmem:[#allocation2 + $0x48] sm:$0xff]
        %v438 = vld [vmem:[#allocation2 + $0x50] sm:$0xff]
        %v439 = vld [vmem:[#allocation2 + $0x58] sm:$0xff]
        %v440 = vld [vmem:[#allocation2 + $0x60] sm:$0xff]
        %v441 = vld [vmem:[#allocation2 + $0x68] sm:$0xff]
        %v442 = vld [vmem:[#allocation2 + $0x70] sm:$0xff]
        %v443 = vld [vmem:[#allocation2 + $0x78] sm:$0xff]
        %v444 = vld [vmem:[#allocation2 + $0x80] sm:$0xff]
        %v445 = vld [vmem:[#allocation2 + $0x88] sm:$0xff]
        %v446 = vld [vmem:[#allocation2 + $0x90] sm:$0xff]
        %v447 = vld [vmem:[#allocation2 + $0x98] sm:$0xff]
        %v448 = vld [vmem:[#allocation2 + $0xa0] sm:$0xff]
        %v449 = vld [vmem:[#allocation2 + $0xa8] sm:$0xff]
        %v450 = vld [vmem:[#allocation2 + $0xb0] sm:$0xff]
        %v451 = vld [vmem:[#allocation2 + $0xb8] sm:$0xff]
        %v452 = vld [vmem:[#allocation2 + $0xc0] sm:$0xff]
        %v453 = vld [vmem:[#allocation2 + $0xc8] sm:$0xff]
        %v454 = vld [vmem:[#allocation2 + $0xd0] sm:$0xff]
        %v455 = vld [vmem:[#allocation2 + $0xd8] sm:$0xff]
        %v456 = vld [vmem:[#allocation2 + $0xe0] sm:$0xff]
        %v457 = vld [vmem:[#allocation2 + $0xe8] sm:$0xff]
        %v458 = vld [vmem:[#allocation2 + $0xf0] sm:$0xff]
        %v459 = vld [vmem:[#allocation2 + $0xf8] sm:$0xff]
        %v460 = vld [vmem:[#allocation2 + $0x100] sm:$0xff]
        %v461 = vld [vmem:[#allocation2 + $0x108] sm:$0xff]
        %v462 = vld [vmem:[#allocation2 + $0x110] sm:$0xff]
        %v463 = vld [vmem:[#allocation2 + $0x118] sm:$0xff]
        %v464 = vld [vmem:[#allocation2 + $0x120] sm:$0xff]
        %v465 = vld [vmem:[#allocation2 + $0x128] sm:$0xff]
        %v466 = vld [vmem:[#allocation2 + $0x130] sm:$0xff]
        %v467 = vld [vmem:[#allocation2 + $0x138] sm:$0xff]
        %vm468 = vcmask 654336
        %v470 = vsel %vm468, %v258, 0
        %v473 = vsel %vm468, %v259, 0
        %v476 = vsel %vm468, %v260, 0
        %v479 = vsel %vm468, %v261, 0
        %v482 = vsel %vm468, %v262, 0
        %484 = vmatprep.subr.mxu0 %v429
        %485 = vmatpush1.msra.mxu0 %v428
        %486 = vmatprep.subr.mxu0 %v433
        %487 = vmatpush1.msra.mxu0 %v432
        %488 = vmatprep.subr.mxu0 %v437
        %489 = vmatpush1.msra.mxu0 %v436
        %490 = vmatprep.subr.mxu0 %v441
        %491 = vmatpush1.msra.mxu0 %v440
        %492 = vmatprep.subr.mxu0 %v445
        %493 = vmatpush1.msra.mxu0 %v444
        %494 = vmatprep.subr.mxu0 %v449
        %495 = vmatpush1.msra.mxu0 %v448
        %496 = vmatprep.subr.mxu0 %v453
        %497 = vmatpush1.msra.mxu0 %v452
        %498 = vmatprep.subr.mxu0 %v457
        %499 = vmatpush1.msra.mxu0 %v456
        %500 = vmatprep.subr.mxu0 %v461
        %501 = vmatpush1.msra.mxu0 %v460
        %502 = vmatprep.subr.mxu0 %v465
        %503 = vmatpush1.msra.mxu0 %v464
        %504 = vmatprep.subr.mxu0 0.0
        %505 = vmatpush1.msra.mxu0 0.0
        %506 = vmatprep.subr.mxu0 0.0
        %507 = vmatpush1.msra.mxu0 0.0
        %508 = vmatprep.subr.mxu0 0.0
        %509 = vmatpush1.msra.mxu0 0.0
        %510 = vmatprep.subr.mxu0 0.0
        %511 = vmatpush1.msra.mxu0 0.0
        %512 = vmatprep.subr.mxu0 0.0
        %513 = vmatpush1.msra.mxu0 0.0
        %514 = vmatprep.subr.mxu0 0.0
        %515 = vmatpush1.msra.mxu0 0.0
        %516 = vmatprep.subr.mxu0 0.0
        %517 = vmatpush1.msra.mxu0 0.0
        %518 = vmatprep.subr.mxu0 0.0
        %519 = vmatpush1.msra.mxu0 0.0
        %520 = vmatprep.subr.mxu0 0.0
        %521 = vmatpush1.msra.mxu0 0.0
        %522 = vmatprep.subr.mxu0 0.0
        %523 = vmatpush1.msra.mxu0 0.0
        %524 = vmatprep.subr.mxu0 0.0
        %525 = vmatpush1.msra.mxu0 0.0
        %526 = vmatprep.subr.mxu0 0.0
        %527 = vmatpush1.msra.mxu0 0.0
        %528 = vmatprep.subr.mxu0 0.0
        %529 = vmatpush1.msra.mxu0 0.0
        %530 = vmatprep.subr.mxu0 0.0
        %531 = vmatpush1.msra.mxu0 0.0
        %532 = vmatprep.subr.mxu0 0.0
        %533 = vmatpush1.msra.mxu0 0.0
        %534 = vmatprep.subr.mxu0 0.0
        %535 = vmatpush1.msra.mxu0 0.0
        %536 = vmatprep.subr.mxu0 0.0
        %537 = vmatpush1.msra.mxu0 0.0
        %538 = vmatprep.subr.mxu0 0.0
        %539 = vmatpush1.msra.mxu0 0.0
        %540 = vmatprep.subr.mxu0 0.0
        %541 = vmatpush1.msra.mxu0 0.0
        %542 = vmatprep.subr.mxu0 0.0
        %543 = vmatpush1.msra.mxu0 0.0
        %544 = vmatprep.subr.mxu0 0.0
        %545 = vmatpush1.msra.mxu0 0.0
        %546 = vmatprep.subr.mxu0 0.0
        %547 = vmatpush1.msra.mxu0 0.0
        %548 = vmatprep.mubr.f32.mxu0 0.0
        %549 = vmatmul.mubr.f32.gmra.mrb[0].mxu0 %v470
        %v550 = vpop.f32.mrb[0].mxu0
        %v551 = vadd.f32 0.0, %v550
        %v552 = vpop.f32.mrb[0].mxu0
        %v553 = vadd.f32 0.0, %v552
        %554 = vmatprep.mubr.f32.mxu0 0.0
        %555 = vmatmul.mubr.f32.gmra.mrb[0].mxu0 %v473
        %v556 = vpop.f32.mrb[0].mxu0
        %v557 = vadd.f32 0.0, %v556
        %v558 = vpop.f32.mrb[0].mxu0
        %v559 = vadd.f32 0.0, %v558
        %560 = vmatprep.mubr.f32.mxu0 0.0
        %561 = vmatmul.mubr.f32.gmra.mrb[0].mxu0 %v476
        %v562 = vpop.f32.mrb[0].mxu0
        %v563 = vadd.f32 0.0, %v562
        %v564 = vpop.f32.mrb[0].mxu0
        %v565 = vadd.f32 0.0, %v564
        %566 = vmatprep.mubr.f32.mxu0 0.0
        %567 = vmatmul.mubr.f32.gmra.mrb[0].mxu0 %v479
        %v568 = vpop.f32.mrb[0].mxu0
        %v569 = vadd.f32 0.0, %v568
        %v570 = vpop.f32.mrb[0].mxu0
        %v571 = vadd.f32 0.0, %v570
        %572 = vmatprep.mubr.f32.mxu0 0.0
        %573 = vmatmul.mubr.f32.gmra.mrb[0].mxu0 %v482
        %v574 = vpop.f32.mrb[0].mxu0
        %v575 = vadd.f32 0.0, %v574
        %v576 = vpop.f32.mrb[0].mxu0
        %v577 = vadd.f32 0.0, %v576
        %578 = vdwg.mxu0
        %579 = vmatprep.subr.mxu0 %v431
        %580 = vmatpush1.msra.mxu0 %v430
        %581 = vmatprep.subr.mxu0 %v435
        %582 = vmatpush1.msra.mxu0 %v434
        %583 = vmatprep.subr.mxu0 %v439
        %584 = vmatpush1.msra.mxu0 %v438
        %585 = vmatprep.subr.mxu0 %v443
        %586 = vmatpush1.msra.mxu0 %v442
        %587 = vmatprep.subr.mxu0 %v447
        %588 = vmatpush1.msra.mxu0 %v446
        %589 = vmatprep.subr.mxu0 %v451
        %590 = vmatpush1.msra.mxu0 %v450
        %591 = vmatprep.subr.mxu0 %v455
        %592 = vmatpush1.msra.mxu0 %v454
        %593 = vmatprep.subr.mxu0 %v459
        %594 = vmatpush1.msra.mxu0 %v458
        %595 = vmatprep.subr.mxu0 %v463
        %596 = vmatpush1.msra.mxu0 %v462
        %597 = vmatprep.subr.mxu0 %v467
        %598 = vmatpush1.msra.mxu0 %v466
        %599 = vmatprep.subr.mxu0 0.0
        %600 = vmatpush1.msra.mxu0 0.0
        %601 = vmatprep.subr.mxu0 0.0
        %602 = vmatpush1.msra.mxu0 0.0
        %603 = vmatprep.subr.mxu0 0.0
        %604 = vmatpush1.msra.mxu0 0.0
        %605 = vmatprep.subr.mxu0 0.0
        %606 = vmatpush1.msra.mxu0 0.0
        %607 = vmatprep.subr.mxu0 0.0
        %608 = vmatpush1.msra.mxu0 0.0
        %609 = vmatprep.subr.mxu0 0.0
        %610 = vmatpush1.msra.mxu0 0.0
        %611 = vmatprep.subr.mxu0 0.0
        %612 = vmatpush1.msra.mxu0 0.0
        %613 = vmatprep.subr.mxu0 0.0
        %614 = vmatpush1.msra.mxu0 0.0
        %615 = vmatprep.subr.mxu0 0.0
        %616 = vmatpush1.msra.mxu0 0.0
        %617 = vmatprep.subr.mxu0 0.0
        %618 = vmatpush1.msra.mxu0 0.0
        %619 = vmatprep.subr.mxu0 0.0
        %620 = vmatpush1.msra.mxu0 0.0
        %621 = vmatprep.subr.mxu0 0.0
        %622 = vmatpush1.msra.mxu0 0.0
        %623 = vmatprep.subr.mxu0 0.0
        %624 = vmatpush1.msra.mxu0 0.0
        %625 = vmatprep.subr.mxu0 0.0
        %626 = vmatpush1.msra.mxu0 0.0
        %627 = vmatprep.subr.mxu0 0.0
        %628 = vmatpush1.msra.mxu0 0.0
        %629 = vmatprep.subr.mxu0 0.0
        %630 = vmatpush1.msra.mxu0 0.0
        %631 = vmatprep.subr.mxu0 0.0
        %632 = vmatpush1.msra.mxu0 0.0
        %633 = vmatprep.subr.mxu0 0.0
        %634 = vmatpush1.msra.mxu0 0.0
        %635 = vmatprep.subr.mxu0 0.0
        %636 = vmatpush1.msra.mxu0 0.0
        %637 = vmatprep.subr.mxu0 0.0
        %638 = vmatpush1.msra.mxu0 0.0
        %639 = vmatprep.subr.mxu0 0.0
        %640 = vmatpush1.msra.mxu0 0.0
        %641 = vmatprep.subr.mxu0 0.0
        %642 = vmatpush1.msra.mxu0 0.0
        %643 = vmatprep.mubr.f32.mxu0 0.0
        %644 = vmatmul.mubr.f32.gmra.mrb[0].mxu0 %v470
        %v645 = vpop.f32.mrb[0].mxu0
        %v646 = vadd.f32 0.0, %v645
        %v647 = vpop.f32.mrb[0].mxu0
        %v648 = vadd.f32 0.0, %v647
        %649 = vmatprep.mubr.f32.mxu0 0.0
        %650 = vmatmul.mubr.f32.gmra.mrb[0].mxu0 %v473
        %v651 = vpop.f32.mrb[0].mxu0
        %v652 = vadd.f32 0.0, %v651
        %v653 = vpop.f32.mrb[0].mxu0
        %v654 = vadd.f32 0.0, %v653
        %655 = vmatprep.mubr.f32.mxu0 0.0
        %656 = vmatmul.mubr.f32.gmra.mrb[0].mxu0 %v476
        %v657 = vpop.f32.mrb[0].mxu0
        %v658 = vadd.f32 0.0, %v657
        %v659 = vpop.f32.mrb[0].mxu0
        %v660 = vadd.f32 0.0, %v659
        %661 = vmatprep.mubr.f32.mxu0 0.0
        %662 = vmatmul.mubr.f32.gmra.mrb[0].mxu0 %v479
        %v663 = vpop.f32.mrb[0].mxu0
        %v664 = vadd.f32 0.0, %v663
        %v665 = vpop.f32.mrb[0].mxu0
        %v666 = vadd.f32 0.0, %v665
        %667 = vmatprep.mubr.f32.mxu0 0.0
        %668 = vmatmul.mubr.f32.gmra.mrb[0].mxu0 %v482
        %v669 = vpop.f32.mrb[0].mxu0
        %v670 = vadd.f32 0.0, %v669
        %v671 = vpop.f32.mrb[0].mxu0
        %v672 = vadd.f32 0.0, %v671
        %673 = vdwg.mxu0
        %674 = vrot.lane.b32.xlu0 %v551, 3
        %v675 = vpop.permute.xlu0 %674
        %676 = vrot.lane.b32.xlu0 %v553, 3
        %v677 = vpop.permute.xlu0 %676
        %678 = vrot.lane.b32.xlu0 %v646, 3
        %v679 = vpop.permute.xlu0 %678
        %680 = vrot.lane.b32.xlu0 %v648, 3
        %v681 = vpop.permute.xlu0 %680
        %vm682 = vcmp.lt.s32.totalorder %v303, 3
        %v683 = vsel %vm682, %v679, %v681
        %v684 = vsel %vm682, %v677, %v679
        %v685 = vsel %vm682, %v675, %v677
        %v686 = vsel %vm682, %v681, %v675
        %687 = vrot.lane.b32.xlu0 %v557, 1
        %v688 = vpop.permute.xlu0 %687
        %689 = vrot.lane.b32.xlu0 %v559, 1
        %v690 = vpop.permute.xlu0 %689
        %691 = vrot.lane.b32.xlu0 %v652, 1
        %v692 = vpop.permute.xlu0 %691
        %693 = vrot.lane.b32.xlu0 %v654, 1
        %v694 = vpop.permute.xlu0 %693
        %vm695 = vcmp.lt.s32.totalorder %v303, 1
        %v696 = vsel %vm695, %v692, %v694
        %v697 = vsel %vm695, %v690, %v692
        %v698 = vsel %vm695, %v688, %v690
        %v699 = vsel %vm695, %v694, %v688
        %v700 = vadd.f32 %v686, %v699
        %v701 = vadd.f32 %v685, %v698
        %v702 = vadd.f32 %v684, %v697
        %v703 = vadd.f32 %v683, %v696
        %v704 = vadd.f32 %v700, %v563
        %v705 = vadd.f32 %v701, %v565
        %v706 = vadd.f32 %v702, %v658
        %v707 = vadd.f32 %v703, %v660
        %708 = vrot.lane.b32.xlu0 %v569, 127
        %v709 = vpop.permute.xlu0 %708
        %710 = vrot.lane.b32.xlu0 %v571, 127
        %v711 = vpop.permute.xlu0 %710
        %712 = vrot.lane.b32.xlu0 %v664, 127
        %v713 = vpop.permute.xlu0 %712
        %714 = vrot.lane.b32.xlu0 %v666, 127
        %v715 = vpop.permute.xlu0 %714
        %vm716 = vcmp.lt.s32.totalorder %v303, 127
        %v717 = vsel %vm716, %v713, %v715
        %v718 = vsel %vm716, %v711, %v713
        %v719 = vsel %vm716, %v709, %v711
        %v720 = vsel %vm716, %v715, %v709
        %v721 = vadd.f32 %v704, %v719
        %v722 = vadd.f32 %v705, %v718
        %v723 = vadd.f32 %v706, %v717
        %v724 = vadd.f32 %v707, %v720
        %725 = vrot.lane.b32.xlu0 %v575, 125
        %v726 = vpop.permute.xlu0 %725
        %727 = vrot.lane.b32.xlu0 %v577, 125
        %v728 = vpop.permute.xlu0 %727
        %729 = vrot.lane.b32.xlu0 %v670, 125
        %v730 = vpop.permute.xlu0 %729
        %731 = vrot.lane.b32.xlu0 %v672, 125
        %v732 = vpop.permute.xlu0 %731
        %vm733 = vcmp.lt.s32.totalorder %v303, 125
        %v734 = vsel %vm733, %v730, %v732
        %v735 = vsel %vm733, %v728, %v730
        %v736 = vsel %vm733, %v726, %v728
        %v737 = vsel %vm733, %v732, %v726
        %v738 = vadd.f32 %v721, %v736
        %v739 = vadd.f32 %v722, %v735
        %v740 = vadd.f32 %v723, %v734
        %v741 = vadd.f32 %v724, %v737
        %v743 = vlaneseq
        %v744 = vshrl.u32 %v743, 7
        %v745 = vsub.s32 0, %v744
        %v746 = vrot.slane %v268, %v745
        %v747 = vlaneseq
        %v748 = vshrl.u32 %v747, 7
        %v749 = vsub.s32 1, %v748
        %v750 = vrot.slane %v268, %v749
        %v751 = vlaneseq
        %v752 = vshrl.u32 %v751, 7
        %v753 = vsub.s32 2, %v752
        %v754 = vrot.slane %v268, %v753
        %v755 = vlaneseq
        %v756 = vshrl.u32 %v755, 7
        %v757 = vsub.s32 3, %v756
        %v758 = vrot.slane %v268, %v757
        %v763 = vmul.f32 %v738, %v746
        %v764 = vmul.f32 %v739, %v750
        %v765 = vmul.f32 %v740, %v754
        %v766 = vmul.f32 %v741, %v758
        %767 = vrot.lane.b32.xlu0 %v763, 22
        %v768 = vpop.permute.xlu0 %767
        %769 = vrot.lane.b32.xlu0 %v764, 22
        %v770 = vpop.permute.xlu0 %769
        %771 = vrot.lane.b32.xlu0 %v765, 22
        %v772 = vpop.permute.xlu0 %771
        %773 = vrot.lane.b32.xlu0 %v766, 22
        %v774 = vpop.permute.xlu0 %773
        %v775 = vsel %vm337, %v772, %v774
        %v776 = vsel %vm337, %v770, %v772
        %v777 = vsel %vm337, %v768, %v770
        %v778 = vsel %vm337, %v774, %v768
        %779 = vst [vmem:[#allocation3] sm:$0xff] %v778
        %780 = vst [vmem:[#allocation3 + $0x8] sm:$0xff] %v777
        %781 = vst [vmem:[#allocation3 + $0x10] sm:$0xff] %v776
        %782 = vst [vmem:[#allocation3 + $0x18] sm:$0xff] %v775
        %783 = vst [vmem:[#allocation3 + $0x20] sm:$0xff] %v763
        %784 = vst [vmem:[#allocation3 + $0x28] sm:$0xff] %v764
        %785 = vst [vmem:[#allocation3 + $0x30] sm:$0xff] %v765
        %786 = vst [vmem:[#allocation3 + $0x38] sm:$0xff] %v766
        %787 = vrot.lane.b32.xlu0 %v763, 106
        %v788 = vpop.permute.xlu0 %787
        %789 = vrot.lane.b32.xlu0 %v764, 106
        %v790 = vpop.permute.xlu0 %789
        %791 = vrot.lane.b32.xlu0 %v765, 106
        %v792 = vpop.permute.xlu0 %791
        %793 = vrot.lane.b32.xlu0 %v766, 106
        %v794 = vpop.permute.xlu0 %793
        %v795 = vsel %vm378, %v792, %v794
        %v796 = vsel %vm378, %v790, %v792
        %v797 = vsel %vm378, %v788, %v790
        %v798 = vsel %vm378, %v794, %v788
        %799 = vst [vmem:[#allocation3 + $0x40] sm:$0xff] %v797
        %800 = vst [vmem:[#allocation3 + $0x48] sm:$0xff] %v796
        %801 = vst [vmem:[#allocation3 + $0x50] sm:$0xff] %v795
        %802 = vst [vmem:[#allocation3 + $0x58] sm:$0xff] %v798
        %v803 = vld [vmem:[#allocation3] sm:$0xff]
        %v804 = vld [vmem:[#allocation3 + $0x8] sm:$0xff]
        %v805 = vld [vmem:[#allocation3 + $0x10] sm:$0xff]
        %v806 = vld [vmem:[#allocation3 + $0x18] sm:$0xff]
        %v807 = vld [vmem:[#allocation3 + $0x20] sm:$0xff]
        %v808 = vld [vmem:[#allocation3 + $0x28] sm:$0xff]
        %v809 = vld [vmem:[#allocation3 + $0x30] sm:$0xff]
        %v810 = vld [vmem:[#allocation3 + $0x38] sm:$0xff]
        %v811 = vld [vmem:[#allocation3 + $0x40] sm:$0xff]
        %v812 = vld [vmem:[#allocation3 + $0x48] sm:$0xff]
        %v813 = vld [vmem:[#allocation3 + $0x50] sm:$0xff]
        %v814 = vld [vmem:[#allocation3 + $0x58] sm:$0xff]
        %vm815 = vcmask 195584
        %v817 = vsel %vm815, %v263, 0
        %v820 = vsel %vm815, %v264, 0
        %v823 = vsel %vm815, %v265, 0
        %825 = vmatprep.subr.mxu0 %v804
        %826 = vmatpush1.msra.mxu0 %v803
        %827 = vmatprep.subr.mxu0 %v808
        %828 = vmatpush1.msra.mxu0 %v807
        %829 = vmatprep.subr.mxu0 %v812
        %830 = vmatpush1.msra.mxu0 %v811
        %831 = vmatprep.subr.mxu0 0.0
        %832 = vmatpush1.msra.mxu0 0.0
        %833 = vmatprep.subr.mxu0 0.0
        %834 = vmatpush1.msra.mxu0 0.0
        %835 = vmatprep.subr.mxu0 0.0
        %836 = vmatpush1.msra.mxu0 0.0
        %837 = vmatprep.subr.mxu0 0.0
        %838 = vmatpush1.msra.mxu0 0.0
        %839 = vmatprep.subr.mxu0 0.0
        %840 = vmatpush1.msra.mxu0 0.0
        %841 = vmatprep.subr.mxu0 0.0
        %842 = vmatpush1.msra.mxu0 0.0
        %843 = vmatprep.subr.mxu0 0.0
        %844 = vmatpush1.msra.mxu0 0.0
        %845 = vmatprep.subr.mxu0 0.0
        %846 = vmatpush1.msra.mxu0 0.0
        %847 = vmatprep.subr.mxu0 0.0
        %848 = vmatpush1.msra.mxu0 0.0
        %849 = vmatprep.subr.mxu0 0.0
        %850 = vmatpush1.msra.mxu0 0.0
        %851 = vmatprep.subr.mxu0 0.0
        %852 = vmatpush1.msra.mxu0 0.0
        %853 = vmatprep.subr.mxu0 0.0
        %854 = vmatpush1.msra.mxu0 0.0
        %855 = vmatprep.subr.mxu0 0.0
        %856 = vmatpush1.msra.mxu0 0.0
        %857 = vmatprep.subr.mxu0 0.0
        %858 = vmatpush1.msra.mxu0 0.0
        %859 = vmatprep.subr.mxu0 0.0
        %860 = vmatpush1.msra.mxu0 0.0
        %861 = vmatprep.subr.mxu0 0.0
        %862 = vmatpush1.msra.mxu0 0.0
        %863 = vmatprep.subr.mxu0 0.0
        %864 = vmatpush1.msra.mxu0 0.0
        %865 = vmatprep.subr.mxu0 0.0
        %866 = vmatpush1.msra.mxu0 0.0
        %867 = vmatprep.subr.mxu0 0.0
        %868 = vmatpush1.msra.mxu0 0.0
        %869 = vmatprep.subr.mxu0 0.0
        %870 = vmatpush1.msra.mxu0 0.0
        %871 = vmatprep.subr.mxu0 0.0
        %872 = vmatpush1.msra.mxu0 0.0
        %873 = vmatprep.subr.mxu0 0.0
        %874 = vmatpush1.msra.mxu0 0.0
        %875 = vmatprep.subr.mxu0 0.0
        %876 = vmatpush1.msra.mxu0 0.0
        %877 = vmatprep.subr.mxu0 0.0
        %878 = vmatpush1.msra.mxu0 0.0
        %879 = vmatprep.subr.mxu0 0.0
        %880 = vmatpush1.msra.mxu0 0.0
        %881 = vmatprep.subr.mxu0 0.0
        %882 = vmatpush1.msra.mxu0 0.0
        %883 = vmatprep.subr.mxu0 0.0
        %884 = vmatpush1.msra.mxu0 0.0
        %885 = vmatprep.subr.mxu0 0.0
        %886 = vmatpush1.msra.mxu0 0.0
        %887 = vmatprep.subr.mxu0 0.0
        %888 = vmatpush1.msra.mxu0 0.0
        %889 = vmatprep.mubr.f32.mxu0 0.0
        %890 = vmatmul.mubr.f32.gmra.mrb[0].mxu0 %v817
        %v891 = vpop.f32.mrb[0].mxu0
        %v892 = vadd.f32 0.0, %v891
        %v893 = vpop.f32.mrb[0].mxu0
        %v894 = vadd.f32 0.0, %v893
        %895 = vmatprep.mubr.f32.mxu0 0.0
        %896 = vmatmul.mubr.f32.gmra.mrb[0].mxu0 %v820
        %v897 = vpop.f32.mrb[0].mxu0
        %v898 = vadd.f32 0.0, %v897
        %v899 = vpop.f32.mrb[0].mxu0
        %v900 = vadd.f32 0.0, %v899
        %901 = vmatprep.mubr.f32.mxu0 0.0
        %902 = vmatmul.mubr.f32.gmra.mrb[0].mxu0 %v823
        %v903 = vpop.f32.mrb[0].mxu0
        %v904 = vadd.f32 0.0, %v903
        %v905 = vpop.f32.mrb[0].mxu0
        %v906 = vadd.f32 0.0, %v905
        %907 = vdwg.mxu0
        %908 = vmatprep.subr.mxu0 %v806
        %909 = vmatpush1.msra.mxu0 %v805
        %910 = vmatprep.subr.mxu0 %v810
        %911 = vmatpush1.msra.mxu0 %v809
        %912 = vmatprep.subr.mxu0 %v814
        %913 = vmatpush1.msra.mxu0 %v813
        %914 = vmatprep.subr.mxu0 0.0
        %915 = vmatpush1.msra.mxu0 0.0
        %916 = vmatprep.subr.mxu0 0.0
        %917 = vmatpush1.msra.mxu0 0.0
        %918 = vmatprep.subr.mxu0 0.0
        %919 = vmatpush1.msra.mxu0 0.0
        %920 = vmatprep.subr.mxu0 0.0
        %921 = vmatpush1.msra.mxu0 0.0
        %922 = vmatprep.subr.mxu0 0.0
        %923 = vmatpush1.msra.mxu0 0.0
        %924 = vmatprep.subr.mxu0 0.0
        %925 = vmatpush1.msra.mxu0 0.0
        %926 = vmatprep.subr.mxu0 0.0
        %927 = vmatpush1.msra.mxu0 0.0
        %928 = vmatprep.subr.mxu0 0.0
        %929 = vmatpush1.msra.mxu0 0.0
        %930 = vmatprep.subr.mxu0 0.0
        %931 = vmatpush1.msra.mxu0 0.0
        %932 = vmatprep.subr.mxu0 0.0
        %933 = vmatpush1.msra.mxu0 0.0
        %934 = vmatprep.subr.mxu0 0.0
        %935 = vmatpush1.msra.mxu0 0.0
        %936 = vmatprep.subr.mxu0 0.0
        %937 = vmatpush1.msra.mxu0 0.0
        %938 = vmatprep.subr.mxu0 0.0
        %939 = vmatpush1.msra.mxu0 0.0
        %940 = vmatprep.subr.mxu0 0.0
        %941 = vmatpush1.msra.mxu0 0.0
        %942 = vmatprep.subr.mxu0 0.0
        %943 = vmatpush1.msra.mxu0 0.0
        %944 = vmatprep.subr.mxu0 0.0
        %945 = vmatpush1.msra.mxu0 0.0
        %946 = vmatprep.subr.mxu0 0.0
        %947 = vmatpush1.msra.mxu0 0.0
        %948 = vmatprep.subr.mxu0 0.0
        %949 = vmatpush1.msra.mxu0 0.0
        %950 = vmatprep.subr.mxu0 0.0
        %951 = vmatpush1.msra.mxu0 0.0
        %952 = vmatprep.subr.mxu0 0.0
        %953 = vmatpush1.msra.mxu0 0.0
        %954 = vmatprep.subr.mxu0 0.0
        %955 = vmatpush1.msra.mxu0 0.0
        %956 = vmatprep.subr.mxu0 0.0
        %957 = vmatpush1.msra.mxu0 0.0
        %958 = vmatprep.subr.mxu0 0.0
        %959 = vmatpush1.msra.mxu0 0.0
        %960 = vmatprep.subr.mxu0 0.0
        %961 = vmatpush1.msra.mxu0 0.0
        %962 = vmatprep.subr.mxu0 0.0
        %963 = vmatpush1.msra.mxu0 0.0
        %964 = vmatprep.subr.mxu0 0.0
        %965 = vmatpush1.msra.mxu0 0.0
        %966 = vmatprep.subr.mxu0 0.0
        %967 = vmatpush1.msra.mxu0 0.0
        %968 = vmatprep.subr.mxu0 0.0
        %969 = vmatpush1.msra.mxu0 0.0
        %970 = vmatprep.subr.mxu0 0.0
        %971 = vmatpush1.msra.mxu0 0.0
        %972 = vmatprep.mubr.f32.mxu0 0.0
        %973 = vmatmul.mubr.f32.gmra.mrb[0].mxu0 %v817
        %v974 = vpop.f32.mrb[0].mxu0
        %v975 = vadd.f32 0.0, %v974
        %v976 = vpop.f32.mrb[0].mxu0
        %v977 = vadd.f32 0.0, %v976
        %978 = vmatprep.mubr.f32.mxu0 0.0
        %979 = vmatmul.mubr.f32.gmra.mrb[0].mxu0 %v820
        %v980 = vpop.f32.mrb[0].mxu0
        %v981 = vadd.f32 0.0, %v980
        %v982 = vpop.f32.mrb[0].mxu0
        %v983 = vadd.f32 0.0, %v982
        %984 = vmatprep.mubr.f32.mxu0 0.0
        %985 = vmatmul.mubr.f32.gmra.mrb[0].mxu0 %v823
        %v986 = vpop.f32.mrb[0].mxu0
        %v987 = vadd.f32 0.0, %v986
        %v988 = vpop.f32.mrb[0].mxu0
        %v989 = vadd.f32 0.0, %v988
        %990 = vdwg.mxu0
        %991 = vrot.lane.b32.xlu0 %v892, 1
        %v992 = vpop.permute.xlu0 %991
        %993 = vrot.lane.b32.xlu0 %v894, 1
        %v994 = vpop.permute.xlu0 %993
        %995 = vrot.lane.b32.xlu0 %v975, 1
        %v996 = vpop.permute.xlu0 %995
        %997 = vrot.lane.b32.xlu0 %v977, 1
        %v998 = vpop.permute.xlu0 %997
        %v999 = vsel %vm695, %v996, %v998
        %v1000 = vsel %vm695, %v994, %v996
        %v1001 = vsel %vm695, %v992, %v994
        %v1002 = vsel %vm695, %v998, %v992
        %v1003 = vadd.f32 %v1002, %v898
        %v1004 = vadd.f32 %v1001, %v900
        %v1005 = vadd.f32 %v1000, %v981
        %v1006 = vadd.f32 %v999, %v983
        %1007 = vrot.lane.b32.xlu0 %v904, 127
        %v1008 = vpop.permute.xlu0 %1007
        %1009 = vrot.lane.b32.xlu0 %v906, 127
        %v1010 = vpop.permute.xlu0 %1009
        %1011 = vrot.lane.b32.xlu0 %v987, 127
        %v1012 = vpop.permute.xlu0 %1011
        %1013 = vrot.lane.b32.xlu0 %v989, 127
        %v1014 = vpop.permute.xlu0 %1013
        %v1015 = vsel %vm716, %v1012, %v1014
        %v1016 = vsel %vm716, %v1010, %v1012
        %v1017 = vsel %vm716, %v1008, %v1010
        %v1018 = vsel %vm716, %v1014, %v1008
        %v1019 = vadd.f32 %v1003, %v1017
        %v1020 = vadd.f32 %v1004, %v1016
        %v1021 = vadd.f32 %v1005, %v1015
        %v1022 = vadd.f32 %v1006, %v1018
        %1024 = vset.pattern.permute.xlu0 0
        %1025 = vperm.xlu0 %1024, %v266
        %v1026 = vpop.permute.xlu0 %1025
        %v1028 = vadd.f32 %v1019, %v1026
        %v1029 = vadd.f32 %v1020, %v1026
        %v1030 = vadd.f32 %v1021, %v1026
        %v1031 = vadd.f32 %v1022, %v1026
        %v1032 = vmax.f32 %v1028, 0.0
        %v1033 = vmax.f32 %v1029, 0.0
        %v1034 = vmax.f32 %v1030, 0.0
        %v1035 = vmax.f32 %v1031, 0.0
        %1037 = vset.pattern.permute.xlu0 0
        %1038 = vperm.xlu0 %1037, %v267
        %v1039 = vpop.permute.xlu0 %1038
        %v1041 = vmul.f32 %v1032, %v1039
        %v1042 = vmul.f32 %v1033, %v1039
        %v1043 = vmul.f32 %v1034, %v1039
        %v1044 = vmul.f32 %v1035, %v1039
        %v1045 = vrot.slane %v1041, 4
        %v1046 = vadd.f32 %v1041, %v1045
        %v1047 = vrot.slane %v1046, 2
        %v1048 = vadd.f32 %v1046, %v1047
        %v1049 = vrot.slane %v1048, 1
        %v1050 = vadd.f32 %v1048, %v1049
        %v1051 = vrot.slane %v1042, 4
        %v1052 = vadd.f32 %v1042, %v1051
        %v1053 = vrot.slane %v1052, 2
        %v1054 = vadd.f32 %v1052, %v1053
        %v1055 = vrot.slane %v1054, 1
        %v1056 = vadd.f32 %v1054, %v1055
        %v1057 = vrot.slane %v1043, 4
        %v1058 = vadd.f32 %v1043, %v1057
        %v1059 = vrot.slane %v1058, 2
        %v1060 = vadd.f32 %v1058, %v1059
        %v1061 = vrot.slane %v1060, 1
        %v1062 = vadd.f32 %v1060, %v1061
        %v1063 = vrot.slane %v1044, 4
        %v1064 = vadd.f32 %v1044, %v1063
        %v1065 = vrot.slane %v1064, 2
        %v1066 = vadd.f32 %v1064, %v1065
        %v1067 = vrot.slane %v1066, 1
        %v1068 = vadd.f32 %v1066, %v1067
        %v1073 = vcombine.low %v1050, %v1056
        %v1074 = vcombine.low %v1062, %v1068
        %v1076 = vunpack.c.l.s4 1966171168
        %v1077 = vunpack.c.0.s8 %v1076
        %v1078 = vlaneseq
        %v1079 = vshrl.u32 %v1078, 7
        %v1080 = vsub.s32 %v1077, %v1079
        %v1081 = vrot.slane %v1073, %v1080
        %v1083 = vunpack.c.l.s4 1966171168
        %v1084 = vunpack.c.0.s8 %v1083
        %v1085 = vlaneseq
        %v1086 = vshrl.u32 %v1085, 7
        %v1087 = vsub.s32 %v1084, %v1086
        %v1088 = vrot.slane %v1074, %v1087
        %v1089 = vcombine.low %v1081, %v1088
        %v1091 = vunpack.c.l.s4 1966171168
        %v1092 = vunpack.c.0.s8 %v1091
        %v1093 = vlaneseq
        %v1094 = vshrl.u32 %v1093, 7
        %v1095 = vsub.s32 %v1092, %v1094
        %v1096 = vrot.slane %v1089, %v1095
        %s1098 = smul.u32 %s270, 4
        %s1099 = scalar_lea.vmem %s256, %s1098
        %v1100 = vlaneseq
        %vm1101 = vcmp.ge.s32.totalorder %v1100, 0
        %vm1102 = vcmp.lt.s32.totalorder %v1100, 512
        %vm1103 = vmand %vm1101, %vm1102
        %1104 = vst.msk [vmem:[%s1099] sm:$0xf] %vm1103, %v1096
      $region49: #{spatial_gate_forward.1} parent=43 // loop_footer
        %s274 = sadd.s32 1, %s270
      $region50: #{spatial_gate_forward.1} parent=43 // loop_footer_branch
        %269 = sbr.rel target = $region46
      $region51: #{spatial_gate_forward.1} parent=43 // loop_exit
        _
      %s1105 = smul.u32 8, %s17
      %p1106 = scmp.lt.s32.totalorder %s1105, 15
      %s1107 = scalar_select %p1106, %s1105, 15
      %s1108 = smul.addr %s1107, 4
      %s1109 = scalar_lea.vmem %s6, %s1108
      // Predicated region
      $region52: #{spatial_gate_forward.1} parent=43 // pred_check
        %p1110 = pneg %p166
      $region53: #{spatial_gate_forward.1} parent=43 // pred_check_branch
        %1112 = sbr.rel (%p1110) target = $region55
      $region54: #{spatial_gate_forward.1} parent=43 // pred_region
        %s1113 = smul.u32 8, %s17
      $region55: #{spatial_gate_forward.1} parent=43 // pred_fallthru
        _
    $region44: #{spatial_gate_forward.1} parent=5 // pred_fallthru
      _
    %p1114 = scmp.le.s32.totalorder 2, %s12
    // Predicated region
    $region56: #{spatial_gate_forward.1} parent=5 // pred_check
      %p1115 = pneg %p1114
    $region57: #{spatial_gate_forward.1} parent=5 // pred_check_branch
      %1117 = sbr.rel (%p1115) target = $region59
    $region58: #{spatial_gate_forward.1} parent=5 // pred_region
      %s1118 = ssub.s32 %s12, 2
      // Predicated region
      $region60: #{spatial_gate_forward.1} parent=58 // pred_check
        %p1119 = pneg %p172
      $region61: #{spatial_gate_forward.1} parent=58 // pred_check_branch
        %1121 = sbr.rel (%p1119) target = $region63
      $region62: #{spatial_gate_forward.1} parent=58 // pred_region
        %s1122 = smul.u32 8, %s18
        %p1123 = scmp.lt.s32.totalorder %s1122, 15
        %s1124 = scalar_select %p1123, %s1122, 15
        %s1125 = smul.addr %s1124, 4
        %s1126 = scalar_lea.vmem %s6, %s1125
      $region63: #{spatial_gate_forward.1} parent=58 // pred_fallthru
        _
    $region59: #{spatial_gate_forward.1} parent=5 // pred_fallthru
      _
  $region6: #{spatial_gate_forward.1} parent=0 // loop_footer
    %s16 = sadd.s32 1, %s12
  $region7: #{spatial_gate_forward.1} parent=0 // loop_footer_branch
    %11 = sbr.rel target = $region3
  $region8: #{spatial_gate_forward.1} parent=0 // loop_exit
    _

</llo_original>
